<compile_context>
chip_gen: v7x
topology: tpu7x:2x2x1
jax: 0.10.0
libtpu: 0.0.40
codegen_flags: <defaults>
</compile_context>

<pallas_src>
import math

import jax
import jax.numpy as jnp
from jax import lax
from jax.experimental import pallas as pl
from jax.experimental.pallas import tpu as pltpu


# ----------------------------- tiling helpers ------------------------------

def _round_up(x, m):
    return ((x + m - 1) // m) * m


def _mult128_divisors(n):
    """All multiples of 128 that divide n (n itself a multiple of 128)."""
    return [d for d in range(128, n + 1, 128) if n % d == 0]


def _divisors(n):
    return [d for d in range(1, n + 1) if n % d == 0]


def _largest_le(vals, cap):
    cands = [v for v in vals if v <= cap]
    return max(cands) if cands else min(vals)


def _vmem_capacity_bytes():
    try:
        return int(pltpu.get_tpu_info().vmem_capacity_bytes)
    except Exception:
        return 64 << 20  # conservative fallback (v7x per-TC VMEM)


def _choose_tiles(N, HW_pad, C_in, C_out, weight_buf_bytes, vmem_limit,
                  target_lanes=2048, itemsize=4):
    """Pick (bn, tm): batch samples per step and lane tile (multiple of 128)."""
    divs = _mult128_divisors(HW_pad)
    # Per-lane VMEM cost: double-buffered input (C_in) + output (C_out) tiles.
    per_lane = 2 * (C_in + C_out) * itemsize
    tile_budget = max(vmem_limit - weight_buf_bytes, 4 << 20)
    lane_budget = max((tile_budget * 3 // 4) // per_lane, 128)
    max_lanes = max(128, (min(target_lanes, lane_budget) // 128) * 128)

    tm = _largest_le(divs, max_lanes)
    bn = 1
    if tm < max_lanes:                   # small spatial: block batch samples
        want = max(max_lanes // tm, 1)
        bn = _largest_le(_divisors(N), want)

    # Megacore (v7x): keep >= 2 grid blocks along a parallel axis if possible.
    if (N // bn) * (HW_pad // tm) == 1:
        if bn > 1:
            bn = max(d for d in _divisors(N) if d < bn)
        else:
            smaller = [d for d in divs if d < tm]
            if smaller:
                tm = max(smaller)
    return bn, tm


def _choose_chunk(tm, C_in, C_out, itemsize=4, live_bytes=64 << 10):
    """Lane sub-chunk so the live activation stays ~<= 16 vregs (no spills)."""
    cap = max(live_bytes // (max(C_in, C_out, 8) * itemsize), 128)
    cap = max(128, (cap // 128) * 128)
    return _largest_le(_mult128_divisors(tm), cap)


# --------------------------------- kernel ----------------------------------

def _make_mlp_kernel(depth, bn, tm, chunk, compute_dtype):
    n_chunks = tm // chunk

    def kernel(x_ref, *args):
        # args = (w0, b0, w1, b1, ..., out)
        out_ref = args[-1]
        wb = args[:-1]
        # Hoist weight/bias loads: small, reused by every sample / chunk.
        ws = [wb[2 * i][...].astype(compute_dtype) for i in range(depth)]
        bs = [wb[2 * i + 1][...].astype(jnp.float32) for i in range(depth)]

        def run_stack(xb):  # (C_in, chunk) -> (C_out, chunk)
            h = xb
            for i in range(depth):
                # Lane-dense orientation: (C_out, C_in) @ (C_in, chunk).
                h = jnp.dot(ws[i], h.astype(compute_dtype),
                            preferred_element_type=jnp.float32)
                h = jnp.maximum(h + bs[i], 0.0)          # bias + ReLU
            return h

        for s in range(bn):                              # bn small & static
            if n_chunks == 1:
                out_ref[s, :, :] = run_stack(x_ref[s, :, :]).astype(out_ref.dtype)
            else:
                # Apply the whole layer stack per lane sub-chunk so the live
                # f32 activation stays small (bounds vreg pressure) while the
                # DMA tile stays large.
                def body(c, carry, _s=s):
                    off = pl.multiple_of(c * chunk, 128)
                    xb = x_ref[_s, :, pl.ds(off, chunk)]
                    out_ref[_s, :, pl.ds(off, chunk)] = (
                        run_stack(xb).astype(out_ref.dtype))
                    return carry

                lax.fori_loop(0, n_chunks, body, 0, unroll=True)

    return kernel


# -------------------------------- wrapper -----------------------------------

def mlp_block_pallas(x_nchw, weights, biases, *, use_bf16_compute=False,
                     target_lanes=2048):
    """Apply the fused MlpBlock (stack of 1x1 conv + ReLU), channels-major.

    x_nchw:  (N, C_in, H, W) float32
    weights: list of (C_out_i, C_in_i) arrays (1x1 conv kernels, squeezed)
    biases:  list of (C_out_i,) arrays
    returns: (N, C_out_last, H, W)
    """
    depth = len(weights)
    N, C_in, H, W = x_nchw.shape
    C_out = weights[-1].shape[0]
    HW = H * W
    HW_pad = _round_up(HW, 128)

    # NCHW -> (N, C_in, H*W): pure reshape (already channels-major per sample).
    # Pad the spatial axis so the lane dim is a dense multiple of 128
    # (unmasked vst); padding is sliced off after the kernel.
    x3 = x_nchw.reshape(N, C_in, HW)
    if HW_pad != HW:
        x3 = jnp.pad(x3, ((0, 0), (0, 0), (0, HW_pad - HW)))

    # Biases as column vectors (C_out_i, 1) so they broadcast over lanes.
    biases_col = [b.reshape(-1, 1) for b in biases]

    itemsize = jnp.dtype(x_nchw.dtype).itemsize
    # Weight/bias VMEM (budget conservatively as if double-buffered).
    weight_buf_bytes = 2 * sum(int(w.size + bc.size) * 4
                               for w, bc in zip(weights, biases_col))
    vmem_cap = _vmem_capacity_bytes()
    vmem_limit = min(vmem_cap * 3 // 4, 100 << 20)

    bn, tm = _choose_tiles(N, HW_pad, C_in, C_out, weight_buf_bytes,
                           vmem_limit, target_lanes=target_lanes,
                           itemsize=itemsize)
    chunk = _choose_chunk(tm, C_in, C_out)
    compute_dtype = jnp.bfloat16 if use_bf16_compute else jnp.float32

    kernel = _make_mlp_kernel(depth, bn, tm, chunk, compute_dtype)
    grid = (N // bn, HW_pad // tm)
    flat_wb = [a for pair in zip(weights, biases_col) for a in pair]

    def build_specs(single_buffer_weights):
        in_specs = [pl.BlockSpec((bn, C_in, tm), lambda n, m: (n, 0, m))]
        for w, bc in zip(weights, biases_col):
            if single_buffer_weights:
                # Constant block index: re-DMA elided; single buffer saves VMEM.
                in_specs.append(pl.BlockSpec(w.shape, lambda n, m: (0, 0),
                                             pipeline_mode=pl.Buffered(1)))
                in_specs.append(pl.BlockSpec(bc.shape, lambda n, m: (0, 0),
                                             pipeline_mode=pl.Buffered(1)))
            else:
                in_specs.append(pl.BlockSpec(w.shape, lambda n, m: (0, 0)))
                in_specs.append(pl.BlockSpec(bc.shape, lambda n, m: (0, 0)))
        out_specs = pl.BlockSpec((bn, C_out, tm), lambda n, m: (n, 0, m))
        return in_specs, out_specs

    def run(single_buffer_weights):
        in_specs, out_specs = build_specs(single_buffer_weights)
        return pl.pallas_call(
            kernel,
            out_shape=jax.ShapeDtypeStruct((N, C_out, HW_pad), x_nchw.dtype),
            grid_spec=pltpu.PrefetchScalarGridSpec(
                num_scalar_prefetch=0,
                grid=grid,
                in_specs=in_specs,
                out_specs=out_specs,
            ),
            compiler_params=pltpu.CompilerParams(
                dimension_semantics=("parallel", "parallel"),
                vmem_limit_bytes=int(vmem_limit)),
        )(x3, *flat_wb)

    try:
        out3 = run(single_buffer_weights=True)
    except Exception:
        # Some runtimes may reject pipeline_mode=Buffered(1); fall back.
        out3 = run(single_buffer_weights=False)

    if HW_pad != HW:
        out3 = out3[:, :, :HW]          # drop padded lanes before reshaping
    return out3.reshape(N, C_out, H, W)


# --------------------------- params / reference -----------------------------

def init_mlp_block_params(key, in_features, out_features, depth_of_mlp):
    """Xavier-uniform weights / zero biases, matching nn.Conv2d(k=1) +
    _init_weights in the PyTorch module."""
    weights, biases = [], []
    fin = in_features
    for _ in range(depth_of_mlp):
        key, sub = jax.random.split(key)
        fan_in, fan_out = fin, out_features      # 1x1 kernel -> fan = channels
        bound = math.sqrt(6.0 / (fan_in + fan_out))
        w = jax.random.uniform(sub, (out_features, fin),
                               minval=-bound, maxval=bound, dtype=jnp.float32)
        b = jnp.zeros((out_features,), dtype=jnp.float32)
        weights.append(w)
        biases.append(b)
        fin = out_features
    return weights, biases


def mlp_block_ref(x_nchw, weights, biases):
    """Pure-JAX reference (einsum == 1x1 conv)."""
    out = x_nchw
    for w, b in zip(weights, biases):
        out = jnp.einsum("nchw,oc->nohw", out, w) + b[None, :, None, None]
        out = jnp.maximum(out, 0.0)
    return out


if __name__ == "__main__":
    key = jax.random.PRNGKey(0)
    kx, kp = jax.random.split(key)

    # Small shapes consistent with the module: batch=2, in_channels=4,
    # spatial 16x16, hidden/out=32, depth_of_mlp=3.
    N, C_in, H, W = 2, 4, 16, 16
    C_out, depth = 32, 3

    x = jax.random.normal(kx, (N, C_in, H, W), dtype=jnp.float32)
    weights, biases = init_mlp_block_params(kp, C_in, C_out, depth)

    out = mlp_block_pallas(x, weights, biases)
    out = jax.block_until_ready(out)

    ref = mlp_block_ref(x, weights, biases)
    assert out.shape == (N, C_out, H, W), out.shape
    assert jnp.allclose(out, ref, atol=1e-5, rtol=1e-5), (
        float(jnp.max(jnp.abs(out - ref))))

    print("KERNEL_OK")
</pallas_src>

<mosaic_0001>
module attributes {stable_mosaic.version = 11 : i64} {
  func.func @kernel(%arg0: i32, %arg1: i32, %arg2: memref<1x4x256xf32, #tpu.memory_space<vmem>>, %arg3: memref<32x4xf32, #tpu.memory_space<vmem>>, %arg4: memref<32x1xf32, #tpu.memory_space<vmem>>, %arg5: memref<32x32xf32, #tpu.memory_space<vmem>>, %arg6: memref<32x1xf32, #tpu.memory_space<vmem>>, %arg7: memref<32x32xf32, #tpu.memory_space<vmem>>, %arg8: memref<32x1xf32, #tpu.memory_space<vmem>>, %arg9: memref<1x32x256xf32, #tpu.memory_space<vmem>>) attributes {dimension_semantics = [#tpu.dimension_semantics<parallel>, #tpu.dimension_semantics<parallel>], iteration_bounds = array<i64: 2, 1>, scalar_prefetch = 0 : i64, scratch_operands = 0 : i64, tpu.core_type = #tpu.core_type<tc>, window_params = [{transform_indices = @transform_0, window_bounds = array<i64: 1, 4, 256>}, {pipeline_mode = #tpu.pipeline_mode<synchronous>, transform_indices = @transform_1, window_bounds = array<i64: 32, 4>}, {pipeline_mode = #tpu.pipeline_mode<synchronous>, transform_indices = @transform_2, window_bounds = array<i64: 32, 1>}, {pipeline_mode = #tpu.pipeline_mode<synchronous>, transform_indices = @transform_3, window_bounds = array<i64: 32, 32>}, {pipeline_mode = #tpu.pipeline_mode<synchronous>, transform_indices = @transform_4, window_bounds = array<i64: 32, 1>}, {pipeline_mode = #tpu.pipeline_mode<synchronous>, transform_indices = @transform_5, window_bounds = array<i64: 32, 32>}, {pipeline_mode = #tpu.pipeline_mode<synchronous>, transform_indices = @transform_6, window_bounds = array<i64: 32, 1>}, {transform_indices = @transform_7, window_bounds = array<i64: 1, 32, 256>}]} {
    %c0 = arith.constant 0 : index
    %c0_0 = arith.constant 0 : index
    %0 = vector.load %arg3[%c0, %c0_0] : memref<32x4xf32, #tpu.memory_space<vmem>>, vector<32x4xf32>
    %c0_1 = arith.constant 0 : index
    %c0_2 = arith.constant 0 : index
    %1 = vector.load %arg5[%c0_1, %c0_2] : memref<32x32xf32, #tpu.memory_space<vmem>>, vector<32x32xf32>
    %c0_3 = arith.constant 0 : index
    %c0_4 = arith.constant 0 : index
    %2 = vector.load %arg7[%c0_3, %c0_4] : memref<32x32xf32, #tpu.memory_space<vmem>>, vector<32x32xf32>
    %c0_5 = arith.constant 0 : index
    %c0_6 = arith.constant 0 : index
    %3 = vector.load %arg4[%c0_5, %c0_6] : memref<32x1xf32, #tpu.memory_space<vmem>>, vector<32x1xf32>
    %c0_7 = arith.constant 0 : index
    %c0_8 = arith.constant 0 : index
    %4 = vector.load %arg6[%c0_7, %c0_8] : memref<32x1xf32, #tpu.memory_space<vmem>>, vector<32x1xf32>
    %c0_9 = arith.constant 0 : index
    %c0_10 = arith.constant 0 : index
    %5 = vector.load %arg8[%c0_9, %c0_10] : memref<32x1xf32, #tpu.memory_space<vmem>>, vector<32x1xf32>
    %c0_11 = arith.constant 0 : index
    %c0_12 = arith.constant 0 : index
    %c0_13 = arith.constant 0 : index
    %6 = vector.load %arg2[%c0_11, %c0_12, %c0_13] : memref<1x4x256xf32, #tpu.memory_space<vmem>>, vector<1x4x256xf32>
    %7 = vector.shape_cast %6 : vector<1x4x256xf32> to vector<4x256xf32>
    %cst = arith.constant dense<0.000000e+00> : vector<32x256xf32>
    %8 = tpu.matmul %0, %7, %cst {dimension_numbers = #tpu.dot_dimension_numbers<[1], [0], [0], [1], [0, 0, 1, 1], [], []>} : vector<32x4xf32>, vector<4x256xf32>, vector<32x256xf32> -> vector<32x256xf32>
    %9 = vector.broadcast %3 : vector<32x1xf32> to vector<32x256xf32>
    %10 = arith.addf %8, %9 : vector<32x256xf32>
    %cst_14 = arith.constant 0.000000e+00 : f32
    %11 = vector.broadcast %cst_14 : f32 to vector<32x256xf32>
    %12 = arith.maximumf %10, %11 : vector<32x256xf32>
    %cst_15 = arith.constant dense<0.000000e+00> : vector<32x256xf32>
    %13 = tpu.matmul %1, %12, %cst_15 {dimension_numbers = #tpu.dot_dimension_numbers<[1], [0], [0], [1], [0, 0, 1, 1], [], []>} : vector<32x32xf32>, vector<32x256xf32>, vector<32x256xf32> -> vector<32x256xf32>
    %14 = vector.broadcast %4 : vector<32x1xf32> to vector<32x256xf32>
    %15 = arith.addf %13, %14 : vector<32x256xf32>
    %cst_16 = arith.constant 0.000000e+00 : f32
    %16 = vector.broadcast %cst_16 : f32 to vector<32x256xf32>
    %17 = arith.maximumf %15, %16 : vector<32x256xf32>
    %cst_17 = arith.constant dense<0.000000e+00> : vector<32x256xf32>
    %18 = tpu.matmul %2, %17, %cst_17 {dimension_numbers = #tpu.dot_dimension_numbers<[1], [0], [0], [1], [0, 0, 1, 1], [], []>} : vector<32x32xf32>, vector<32x256xf32>, vector<32x256xf32> -> vector<32x256xf32>
    %19 = vector.broadcast %5 : vector<32x1xf32> to vector<32x256xf32>
    %20 = arith.addf %18, %19 : vector<32x256xf32>
    %cst_18 = arith.constant 0.000000e+00 : f32
    %21 = vector.broadcast %cst_18 : f32 to vector<32x256xf32>
    %22 = arith.maximumf %20, %21 : vector<32x256xf32>
    %c0_19 = arith.constant 0 : index
    %c0_20 = arith.constant 0 : index
    %c0_21 = arith.constant 0 : index
    %23 = vector.load %arg9[%c0_19, %c0_20, %c0_21] : memref<1x32x256xf32, #tpu.memory_space<vmem>>, vector<1x32x256xf32>
    %24 = vector.shape_cast %23 : vector<1x32x256xf32> to vector<32x256xf32>
    %25 = vector.shape_cast %22 : vector<32x256xf32> to vector<1x32x256xf32>
    tpu.vector_store %arg9[%c0_19, %c0_20, %c0_21], %25 {strides = array<i32>} : memref<1x32x256xf32, #tpu.memory_space<vmem>>, vector<1x32x256xf32>,
    return
  }
  func.func @transform_0(%arg0: i32, %arg1: i32) -> (i32, i32, i32) {
    %c0_i32 = arith.constant 0 : i32
    %c0_i32_0 = arith.constant 0 : i32
    return %arg0, %c0_i32, %arg1 : i32, i32, i32
  }
  func.func @transform_1(%arg0: i32, %arg1: i32) -> (i32, i32) {
    %c0_i32 = arith.constant 0 : i32
    %c0_i32_0 = arith.constant 0 : i32
    %c0_i32_1 = arith.constant 0 : i32
    return %c0_i32, %c0_i32_0 : i32, i32
  }
  func.func @transform_2(%arg0: i32, %arg1: i32) -> (i32, i32) {
    %c0_i32 = arith.constant 0 : i32
    %c0_i32_0 = arith.constant 0 : i32
    %c0_i32_1 = arith.constant 0 : i32
    return %c0_i32, %c0_i32_0 : i32, i32
  }
  func.func @transform_3(%arg0: i32, %arg1: i32) -> (i32, i32) {
    %c0_i32 = arith.constant 0 : i32
    %c0_i32_0 = arith.constant 0 : i32
    %c0_i32_1 = arith.constant 0 : i32
    return %c0_i32, %c0_i32_0 : i32, i32
  }
  func.func @transform_4(%arg0: i32, %arg1: i32) -> (i32, i32) {
    %c0_i32 = arith.constant 0 : i32
    %c0_i32_0 = arith.constant 0 : i32
    %c0_i32_1 = arith.constant 0 : i32
    return %c0_i32, %c0_i32_0 : i32, i32
  }
  func.func @transform_5(%arg0: i32, %arg1: i32) -> (i32, i32) {
    %c0_i32 = arith.constant 0 : i32
    %c0_i32_0 = arith.constant 0 : i32
    %c0_i32_1 = arith.constant 0 : i32
    return %c0_i32, %c0_i32_0 : i32, i32
  }
  func.func @transform_6(%arg0: i32, %arg1: i32) -> (i32, i32) {
    %c0_i32 = arith.constant 0 : i32
    %c0_i32_0 = arith.constant 0 : i32
    %c0_i32_1 = arith.constant 0 : i32
    return %c0_i32, %c0_i32_0 : i32, i32
  }
  func.func @transform_7(%arg0: i32, %arg1: i32) -> (i32, i32, i32) {
    %c0_i32 = arith.constant 0 : i32
    %c0_i32_0 = arith.constant 0 : i32
    return %arg0, %c0_i32, %arg1 : i32, i32, i32
  }
}

module attributes {stable_mosaic.version = 11 : i64} {
  func.func @kernel(%arg0: i32, %arg1: i32, %arg2: memref<1x4x256xf32, #tpu.memory_space<vmem>>, %arg3: memref<32x4xf32, #tpu.memory_space<vmem>>, %arg4: memref<32x1xf32, #tpu.memory_space<vmem>>, %arg5: memref<32x32xf32, #tpu.memory_space<vmem>>, %arg6: memref<32x1xf32, #tpu.memory_space<vmem>>, %arg7: memref<32x32xf32, #tpu.memory_space<vmem>>, %arg8: memref<32x1xf32, #tpu.memory_space<vmem>>, %arg9: memref<1x32x256xf32, #tpu.memory_space<vmem>>) attributes {dimension_semantics = [#tpu.dimension_semantics<parallel>, #tpu.dimension_semantics<parallel>], iteration_bounds = array<i64: 2, 1>, scalar_prefetch = 0 : i64, scratch_operands = 0 : i64, tpu.core_type = #tpu.core_type<tc>, window_params = [{transform_indices = @transform_0, window_bounds = array<i64: 1, 4, 256>}, {pipeline_mode = #tpu.pipeline_mode<synchronous>, transform_indices = @transform_1, window_bounds = array<i64: 32, 4>}, {pipeline_mode = #tpu.pipeline_mode<synchronous>, transform_indices = @transform_2, window_bounds = array<i64: 32, 1>}, {pipeline_mode = #tpu.pipeline_mode<synchronous>, transform_indices = @transform_3, window_bounds = array<i64: 32, 32>}, {pipeline_mode = #tpu.pipeline_mode<synchronous>, transform_indices = @transform_4, window_bounds = array<i64: 32, 1>}, {pipeline_mode = #tpu.pipeline_mode<synchronous>, transform_indices = @transform_5, window_bounds = array<i64: 32, 32>}, {pipeline_mode = #tpu.pipeline_mode<synchronous>, transform_indices = @transform_6, window_bounds = array<i64: 32, 1>}, {transform_indices = @transform_7, window_bounds = array<i64: 1, 32, 256>}]} {
    %c0 = arith.constant 0 : index
    %c0_0 = arith.constant 0 : index
    %0 = vector.load %arg3[%c0, %c0_0] : memref<32x4xf32, #tpu.memory_space<vmem>>, vector<32x4xf32>
    %c0_1 = arith.constant 0 : index
    %c0_2 = arith.constant 0 : index
    %1 = vector.load %arg5[%c0_1, %c0_2] : memref<32x32xf32, #tpu.memory_space<vmem>>, vector<32x32xf32>
    %c0_3 = arith.constant 0 : index
    %c0_4 = arith.constant 0 : index
    %2 = vector.load %arg7[%c0_3, %c0_4] : memref<32x32xf32, #tpu.memory_space<vmem>>, vector<32x32xf32>
    %c0_5 = arith.constant 0 : index
    %c0_6 = arith.constant 0 : index
    %3 = vector.load %arg4[%c0_5, %c0_6] : memref<32x1xf32, #tpu.memory_space<vmem>>, vector<32x1xf32>
    %c0_7 = arith.constant 0 : index
    %c0_8 = arith.constant 0 : index
    %4 = vector.load %arg6[%c0_7, %c0_8] : memref<32x1xf32, #tpu.memory_space<vmem>>, vector<32x1xf32>
    %c0_9 = arith.constant 0 : index
    %c0_10 = arith.constant 0 : index
    %5 = vector.load %arg8[%c0_9, %c0_10] : memref<32x1xf32, #tpu.memory_space<vmem>>, vector<32x1xf32>
    %c0_11 = arith.constant 0 : index
    %c0_12 = arith.constant 0 : index
    %c0_13 = arith.constant 0 : index
    %6 = vector.load %arg2[%c0_11, %c0_12, %c0_13] : memref<1x4x256xf32, #tpu.memory_space<vmem>>, vector<1x4x256xf32>
    %7 = vector.shape_cast %6 : vector<1x4x256xf32> to vector<4x256xf32>
    %cst = arith.constant dense<0.000000e+00> : vector<32x256xf32>
    %8 = tpu.matmul %0, %7, %cst {dimension_numbers = #tpu.dot_dimension_numbers<[1], [0], [0], [1], [0, 0, 1, 1], [], []>} : vector<32x4xf32>, vector<4x256xf32>, vector<32x256xf32> -> vector<32x256xf32>
    %9 = vector.broadcast %3 : vector<32x1xf32> to vector<32x256xf32>
    %10 = arith.addf %8, %9 : vector<32x256xf32>
    %cst_14 = arith.constant 0.000000e+00 : f32
    %11 = vector.broadcast %cst_14 : f32 to vector<32x256xf32>
    %12 = arith.maximumf %10, %11 : vector<32x256xf32>
    %cst_15 = arith.constant dense<0.000000e+00> : vector<32x256xf32>
    %13 = tpu.matmul %1, %12, %cst_15 {dimension_numbers = #tpu.dot_dimension_numbers<[1], [0], [0], [1], [0, 0, 1, 1], [], []>} : vector<32x32xf32>, vector<32x256xf32>, vector<32x256xf32> -> vector<32x256xf32>
    %14 = vector.broadcast %4 : vector<32x1xf32> to vector<32x256xf32>
    %15 = arith.addf %13, %14 : vector<32x256xf32>
    %cst_16 = arith.constant 0.000000e+00 : f32
    %16 = vector.broadcast %cst_16 : f32 to vector<32x256xf32>
    %17 = arith.maximumf %15, %16 : vector<32x256xf32>
    %cst_17 = arith.constant dense<0.000000e+00> : vector<32x256xf32>
    %18 = tpu.matmul %2, %17, %cst_17 {dimension_numbers = #tpu.dot_dimension_numbers<[1], [0], [0], [1], [0, 0, 1, 1], [], []>} : vector<32x32xf32>, vector<32x256xf32>, vector<32x256xf32> -> vector<32x256xf32>
    %19 = vector.broadcast %5 : vector<32x1xf32> to vector<32x256xf32>
    %20 = arith.addf %18, %19 : vector<32x256xf32>
    %cst_18 = arith.constant 0.000000e+00 : f32
    %21 = vector.broadcast %cst_18 : f32 to vector<32x256xf32>
    %22 = arith.maximumf %20, %21 : vector<32x256xf32>
    %c0_19 = arith.constant 0 : index
    %c0_20 = arith.constant 0 : index
    %c0_21 = arith.constant 0 : index
    %23 = vector.load %arg9[%c0_19, %c0_20, %c0_21] : memref<1x32x256xf32, #tpu.memory_space<vmem>>, vector<1x32x256xf32>
    %24 = vector.shape_cast %23 : vector<1x32x256xf32> to vector<32x256xf32>
    %25 = vector.shape_cast %22 : vector<32x256xf32> to vector<1x32x256xf32>
    tpu.vector_store %arg9[%c0_19, %c0_20, %c0_21], %25 {strides = array<i32>} : memref<1x32x256xf32, #tpu.memory_space<vmem>>, vector<1x32x256xf32>,
    return
  }
  func.func @transform_0(%arg0: i32, %arg1: i32) -> (i32, i32, i32) {
    %c0_i32 = arith.constant 0 : i32
    %c0_i32_0 = arith.constant 0 : i32
    return %arg0, %c0_i32, %arg1 : i32, i32, i32
  }
  func.func @transform_1(%arg0: i32, %arg1: i32) -> (i32, i32) {
    %c0_i32 = arith.constant 0 : i32
    %c0_i32_0 = arith.constant 0 : i32
    %c0_i32_1 = arith.constant 0 : i32
    return %c0_i32, %c0_i32_0 : i32, i32
  }
  func.func @transform_2(%arg0: i32, %arg1: i32) -> (i32, i32) {
    %c0_i32 = arith.constant 0 : i32
    %c0_i32_0 = arith.constant 0 : i32
    %c0_i32_1 = arith.constant 0 : i32
    return %c0_i32, %c0_i32_0 : i32, i32
  }
  func.func @transform_3(%arg0: i32, %arg1: i32) -> (i32, i32) {
    %c0_i32 = arith.constant 0 : i32
    %c0_i32_0 = arith.constant 0 : i32
    %c0_i32_1 = arith.constant 0 : i32
    return %c0_i32, %c0_i32_0 : i32, i32
  }
  func.func @transform_4(%arg0: i32, %arg1: i32) -> (i32, i32) {
    %c0_i32 = arith.constant 0 : i32
    %c0_i32_0 = arith.constant 0 : i32
    %c0_i32_1 = arith.constant 0 : i32
    return %c0_i32, %c0_i32_0 : i32, i32
  }
  func.func @transform_5(%arg0: i32, %arg1: i32) -> (i32, i32) {
    %c0_i32 = arith.constant 0 : i32
    %c0_i32_0 = arith.constant 0 : i32
    %c0_i32_1 = arith.constant 0 : i32
    return %c0_i32, %c0_i32_0 : i32, i32
  }
  func.func @transform_6(%arg0: i32, %arg1: i32) -> (i32, i32) {
    %c0_i32 = arith.constant 0 : i32
    %c0_i32_0 = arith.constant 0 : i32
    %c0_i32_1 = arith.constant 0 : i32
    return %c0_i32, %c0_i32_0 : i32, i32
  }
  func.func @transform_7(%arg0: i32, %arg1: i32) -> (i32, i32, i32) {
    %c0_i32 = arith.constant 0 : i32
    %c0_i32_0 = arith.constant 0 : i32
    return %arg0, %c0_i32, %arg1 : i32, i32, i32
  }
}

</mosaic_0001>

<llo_original>
// kernel: tpu_custom_call.1
$region0: #{tpu_custom_call.1}
  #allocation0 [shape = 'u32[]', space=smem, size = 0x4, offset = 0x4, fixed_abs, tag = 'smem constant byte address 0x4 - core index']
  #allocation1 [shape = 'u32[144,128]{1,0:T(1,128)}', space=vmem, size = 0x12000, scoped, tag = 'internal scratch']
  %s0 = inlined_call_operand.vmem [shape: f32[2,4,256], index: 0, kind: input, shape index: {}]
  %s1 = inlined_call_operand.vmem [shape: f32[32,4], index: 1, kind: input, shape index: {}]
  %s2 = inlined_call_operand.vmem [shape: f32[32,1], index: 2, kind: input, shape index: {}]
  %s3 = inlined_call_operand.vmem [shape: f32[32,32], index: 3, kind: input, shape index: {}]
  %s4 = inlined_call_operand.vmem [shape: f32[32,1], index: 4, kind: input, shape index: {}]
  %s5 = inlined_call_operand.vmem [shape: f32[32,32], index: 5, kind: input, shape index: {}]
  %s6 = inlined_call_operand.vmem [shape: f32[32,1], index: 6, kind: input, shape index: {}]
  %s7 = inlined_call_operand.hbm [shape: f32[2,32,256], index: 7, kind: output, shape index: {}]
  %s8 = sld [smem:[#allocation0]]
  $region61: #{tpu_custom_call.1} parent=0
    _
  %s10 = ssub.s32 1, %s8
  %s11 = scalar_select 0, %s10, %s8
  $region1: #{tpu_custom_call.1} parent=0
    #allocation2 [shape = 'u8[65536]{0}', space=vmem, size = 0x10000, scoped, tag = 'output window, operand 0']
    #allocation3 [shape = 's32[2]{0}', space=sflag, size = 0x8, scoped, tag = 'scoped memory for tpu_custom_call.1']
    %12 = vsyncpa [#allocation3], 0
    %s13 = scalar_lea.sflag [#allocation3], 1
    %14 = vsyncpa %s13, 0
    loop: start=0, step=1, limit=4
    $region2: #{tpu_custom_call.1} parent=1 // loop_pre_header
      _
    $region3: #{tpu_custom_call.1} parent=1 // loop_header
      %s16 = sphi 0, %s20
      %p17 = scmp.ge.s32.totalorder %s16, 4
      %s23 = sphi 0, %s35
      %s24 = sphi 0, %s31
      %s25 = sphi 0, %s23
      %s26 = sphi 0, %s24
      %s27 = sphi 0, %s25
      %s28 = sphi 0, %s26
      %s40 = sphi 0, %s42
      %s43 = sphi 0, %s40
      %s44 = sphi 0, %s43
      %s60 = sphi 0, %s44
      %s64 = sphi 0, %s64
      %s66 = sphi 0, %s64
      %s67 = sphi 0, %s66
      %s81 = sphi 0, %s67
      %s85 = sphi 0, %s85
      %s87 = sphi 0, %s85
      %s88 = sphi 0, %s87
      %s102 = sphi 0, %s88
      %s106 = sphi 0, %s106
      %s108 = sphi 0, %s106
      %s109 = sphi 0, %s108
      %s123 = sphi 0, %s109
      %s127 = sphi 0, %s127
      %s129 = sphi 0, %s127
      %s130 = sphi 0, %s129
      %s144 = sphi 0, %s130
      %s148 = sphi 0, %s148
      %s150 = sphi 0, %s148
      %s151 = sphi 0, %s150
      %s165 = sphi 0, %s151
      %s169 = sphi 0, %s169
      %s171 = sphi 0, %s169
      %s172 = sphi 0, %s171
      %s186 = sphi 0, %s172
      %s194 = sphi 0, %s196
      %s197 = sphi 0, %s194
      %s198 = sphi 0, %s197
      %s214 = sphi 0, %s198
    $region4: #{tpu_custom_call.1} parent=1 // loop_header_branch
      %19 = sbr.rel (%p17) target = $region8
    $region5: #{tpu_custom_call.1} parent=1 // loop_body
      %s21 = ssub.s32 %s16, 1
      %s22 = ssub.s32 %s16, 2
      %s29 = sadd.s32 1, %s24
      %p30 = scmp.ge.s32.totalorder %s29, 1
      %s31 = scalar_select %p30, 0, %s29
      %s32 = sadd.s32 1, %s23
      %s33 = scalar_select %p30, %s32, %s23
      %p34 = scmp.ge.s32.totalorder %s33, 2
      %s35 = scalar_select %p34, 0, %s33
      %s36 = ssub.s32 %s23, %s35
      %s37 = ssub.s32 %s24, %s31
      %s38 = sor.u32 %s36, %s37
      %p39 = scmp.eq.s32.totalorder %s38, 0
      %s41 = sadd.s32 %s40, 1
      %s42 = scalar_select %p39, %s40, %s41
      %p45 = pneg %p39
      %p46 = scmp.eq.s32.totalorder %s16, 1
      %p47 = por %p45, %p46
      %p48 = scmp.ne.s32.totalorder %s40, %s43
      %p49 = scmp.eq.s32.totalorder %s16, 0
      %p50 = por %p48, %p49
      %p51 = scmp.ne.s32.totalorder %s40, %s43
      %p52 = scmp.eq.s32.totalorder %s21, 1
      %p53 = por %p51, %p52
      %p54 = scmp.ne.s32.totalorder %s43, %s44
      %p55 = scmp.eq.s32.totalorder %s21, 0
      %p56 = por %p54, %p55
      %p57 = scmp.ne.s32.totalorder %s43, %s44
      %p58 = scmp.eq.s32.totalorder %s22, 1
      %p59 = por %p57, %p58
      %p61 = scmp.ne.s32.totalorder %s44, %s60
      %p62 = scmp.eq.s32.totalorder %s22, 0
      %p63 = por %p61, %p62
      %s65 = sadd.s32 %s64, 1
      %p68 = scmp.eq.s32.totalorder %s16, 1
      %p69 = scmp.ne.s32.totalorder %s64, %s66
      %p70 = scmp.eq.s32.totalorder %s16, 0
      %p71 = por %p69, %p70
      %p72 = scmp.ne.s32.totalorder %s64, %s66
      %p73 = scmp.eq.s32.totalorder %s21, 1
      %p74 = por %p72, %p73
      %p75 = scmp.ne.s32.totalorder %s66, %s67
      %p76 = scmp.eq.s32.totalorder %s21, 0
      %p77 = por %p75, %p76
      %p78 = scmp.ne.s32.totalorder %s66, %s67
      %p79 = scmp.eq.s32.totalorder %s22, 1
      %p80 = por %p78, %p79
      %p82 = scmp.ne.s32.totalorder %s67, %s81
      %p83 = scmp.eq.s32.totalorder %s22, 0
      %p84 = por %p82, %p83
      %s86 = sadd.s32 %s85, 1
      %p89 = scmp.eq.s32.totalorder %s16, 1
      %p90 = scmp.ne.s32.totalorder %s85, %s87
      %p91 = scmp.eq.s32.totalorder %s16, 0
      %p92 = por %p90, %p91
      %p93 = scmp.ne.s32.totalorder %s85, %s87
      %p94 = scmp.eq.s32.totalorder %s21, 1
      %p95 = por %p93, %p94
      %p96 = scmp.ne.s32.totalorder %s87, %s88
      %p97 = scmp.eq.s32.totalorder %s21, 0
      %p98 = por %p96, %p97
      %p99 = scmp.ne.s32.totalorder %s87, %s88
      %p100 = scmp.eq.s32.totalorder %s22, 1
      %p101 = por %p99, %p100
      %p103 = scmp.ne.s32.totalorder %s88, %s102
      %p104 = scmp.eq.s32.totalorder %s22, 0
      %p105 = por %p103, %p104
      %s107 = sadd.s32 %s106, 1
      %p110 = scmp.eq.s32.totalorder %s16, 1
      %p111 = scmp.ne.s32.totalorder %s106, %s108
      %p112 = scmp.eq.s32.totalorder %s16, 0
      %p113 = por %p111, %p112
      %p114 = scmp.ne.s32.totalorder %s106, %s108
      %p115 = scmp.eq.s32.totalorder %s21, 1
      %p116 = por %p114, %p115
      %p117 = scmp.ne.s32.totalorder %s108, %s109
      %p118 = scmp.eq.s32.totalorder %s21, 0
      %p119 = por %p117, %p118
      %p120 = scmp.ne.s32.totalorder %s108, %s109
      %p121 = scmp.eq.s32.totalorder %s22, 1
      %p122 = por %p120, %p121
      %p124 = scmp.ne.s32.totalorder %s109, %s123
      %p125 = scmp.eq.s32.totalorder %s22, 0
      %p126 = por %p124, %p125
      %s128 = sadd.s32 %s127, 1
      %p131 = scmp.eq.s32.totalorder %s16, 1
      %p132 = scmp.ne.s32.totalorder %s127, %s129
      %p133 = scmp.eq.s32.totalorder %s16, 0
      %p134 = por %p132, %p133
      %p135 = scmp.ne.s32.totalorder %s127, %s129
      %p136 = scmp.eq.s32.totalorder %s21, 1
      %p137 = por %p135, %p136
      %p138 = scmp.ne.s32.totalorder %s129, %s130
      %p139 = scmp.eq.s32.totalorder %s21, 0
      %p140 = por %p138, %p139
      %p141 = scmp.ne.s32.totalorder %s129, %s130
      %p142 = scmp.eq.s32.totalorder %s22, 1
      %p143 = por %p141, %p142
      %p145 = scmp.ne.s32.totalorder %s130, %s144
      %p146 = scmp.eq.s32.totalorder %s22, 0
      %p147 = por %p145, %p146
      %s149 = sadd.s32 %s148, 1
      %p152 = scmp.eq.s32.totalorder %s16, 1
      %p153 = scmp.ne.s32.totalorder %s148, %s150
      %p154 = scmp.eq.s32.totalorder %s16, 0
      %p155 = por %p153, %p154
      %p156 = scmp.ne.s32.totalorder %s148, %s150
      %p157 = scmp.eq.s32.totalorder %s21, 1
      %p158 = por %p156, %p157
      %p159 = scmp.ne.s32.totalorder %s150, %s151
      %p160 = scmp.eq.s32.totalorder %s21, 0
      %p161 = por %p159, %p160
      %p162 = scmp.ne.s32.totalorder %s150, %s151
      %p163 = scmp.eq.s32.totalorder %s22, 1
      %p164 = por %p162, %p163
      %p166 = scmp.ne.s32.totalorder %s151, %s165
      %p167 = scmp.eq.s32.totalorder %s22, 0
      %p168 = por %p166, %p167
      %s170 = sadd.s32 %s169, 1
      %p173 = scmp.eq.s32.totalorder %s16, 1
      %p174 = scmp.ne.s32.totalorder %s169, %s171
      %p175 = scmp.eq.s32.totalorder %s16, 0
      %p176 = por %p174, %p175
      %p177 = scmp.ne.s32.totalorder %s169, %s171
      %p178 = scmp.eq.s32.totalorder %s21, 1
      %p179 = por %p177, %p178
      %p180 = scmp.ne.s32.totalorder %s171, %s172
      %p181 = scmp.eq.s32.totalorder %s21, 0
      %p182 = por %p180, %p181
      %p183 = scmp.ne.s32.totalorder %s171, %s172
      %p184 = scmp.eq.s32.totalorder %s22, 1
      %p185 = por %p183, %p184
      %p187 = scmp.ne.s32.totalorder %s172, %s186
      %p188 = scmp.eq.s32.totalorder %s22, 0
      %p189 = por %p187, %p188
      %s190 = ssub.s32 %s23, %s35
      %s191 = ssub.s32 %s24, %s31
      %s192 = sor.u32 %s190, %s191
      %p193 = scmp.eq.s32.totalorder %s192, 0
      %s195 = sadd.s32 %s194, 1
      %s196 = scalar_select %p193, %s194, %s195
      %p199 = pneg %p193
      %p200 = scmp.eq.s32.totalorder %s16, 1
      %p201 = por %p199, %p200
      %p202 = scmp.ne.s32.totalorder %s194, %s197
      %p203 = scmp.eq.s32.totalorder %s16, 0
      %p204 = por %p202, %p203
      %p205 = scmp.ne.s32.totalorder %s194, %s197
      %p206 = scmp.eq.s32.totalorder %s21, 1
      %p207 = por %p205, %p206
      %p208 = scmp.ne.s32.totalorder %s197, %s198
      %p209 = scmp.eq.s32.totalorder %s21, 0
      %p210 = por %p208, %p209
      %p211 = scmp.ne.s32.totalorder %s197, %s198
      %p212 = scmp.eq.s32.totalorder %s22, 1
      %p213 = por %p211, %p212
      %p215 = scmp.ne.s32.totalorder %s198, %s214
      %p216 = scmp.eq.s32.totalorder %s22, 0
      %p217 = por %p215, %p216
      %p218 = scmp.le.s32.totalorder 1, %s16
      %p219 = scmp.lt.s32.totalorder %s16, 3
      %p220 = pnand %p218, %p219
      %p221 = pneg %p220
      // Predicated region
      $region9: #{tpu_custom_call.1} parent=5 // pred_check
        _
      $region10: #{tpu_custom_call.1} parent=5 // pred_check_branch
        %223 = sbr.rel (%p220) target = $region12
      $region11: #{tpu_custom_call.1} parent=5 // pred_region
        %s224 = ssub.s32 %s16, 1
        // Predicated region
        $region13: #{tpu_custom_call.1} parent=11 // pred_check
          %p225 = pneg %p77
        $region14: #{tpu_custom_call.1} parent=11 // pred_check_branch
          %227 = sbr.rel (%p225) target = $region16
        $region15: #{tpu_custom_call.1} parent=11 // pred_region
          _
        $region16: #{tpu_custom_call.1} parent=11 // pred_fallthru
          _
        // Predicated region
        $region17: #{tpu_custom_call.1} parent=11 // pred_check
          %p228 = pneg %p98
        $region18: #{tpu_custom_call.1} parent=11 // pred_check_branch
          %230 = sbr.rel (%p228) target = $region20
        $region19: #{tpu_custom_call.1} parent=11 // pred_region
          _
        $region20: #{tpu_custom_call.1} parent=11 // pred_fallthru
          _
        // Predicated region
        $region21: #{tpu_custom_call.1} parent=11 // pred_check
          %p231 = pneg %p119
        $region22: #{tpu_custom_call.1} parent=11 // pred_check_branch
          %233 = sbr.rel (%p231) target = $region24
        $region23: #{tpu_custom_call.1} parent=11 // pred_region
          _
        $region24: #{tpu_custom_call.1} parent=11 // pred_fallthru
          _
        // Predicated region
        $region25: #{tpu_custom_call.1} parent=11 // pred_check
          %p234 = pneg %p140
        $region26: #{tpu_custom_call.1} parent=11 // pred_check_branch
          %236 = sbr.rel (%p234) target = $region28
        $region27: #{tpu_custom_call.1} parent=11 // pred_region
          _
        $region28: #{tpu_custom_call.1} parent=11 // pred_fallthru
          _
        // Predicated region
        $region29: #{tpu_custom_call.1} parent=11 // pred_check
          %p237 = pneg %p161
        $region30: #{tpu_custom_call.1} parent=11 // pred_check_branch
          %239 = sbr.rel (%p237) target = $region32
        $region31: #{tpu_custom_call.1} parent=11 // pred_region
          _
        $region32: #{tpu_custom_call.1} parent=11 // pred_fallthru
          _
        // Predicated region
        $region33: #{tpu_custom_call.1} parent=11 // pred_check
          %p240 = pneg %p182
        $region34: #{tpu_custom_call.1} parent=11 // pred_check_branch
          %242 = sbr.rel (%p240) target = $region36
        $region35: #{tpu_custom_call.1} parent=11 // pred_region
          _
        $region36: #{tpu_custom_call.1} parent=11 // pred_fallthru
          _
      $region12: #{tpu_custom_call.1} parent=5 // pred_fallthru
        _
      %p243 = scmp.lt.s32.totalorder %s16, 2
      // Predicated region
      $region37: #{tpu_custom_call.1} parent=5 // pred_check
        %p244 = pneg %p243
      $region38: #{tpu_custom_call.1} parent=5 // pred_check_branch
        %246 = sbr.rel (%p244) target = $region40
      $region39: #{tpu_custom_call.1} parent=5 // pred_region
        // Predicated region
        $region41: #{tpu_custom_call.1} parent=39 // pred_check
          %p247 = pneg %p50
        $region42: #{tpu_custom_call.1} parent=39 // pred_check_branch
          %249 = sbr.rel (%p247) target = $region44
        $region43: #{tpu_custom_call.1} parent=39 // pred_region
          %s250 = smul.u32 2, %s24
          %p251 = scmp.lt.s32.totalorder %s23, 1
          %s252 = scalar_select %p251, %s23, 1
          %p253 = scmp.lt.s32.totalorder %s250, 1
          %s254 = scalar_select %p253, %s250, 1
          %s255 = smul.addr %s252, 2
          %s256 = sadd.s32 %s254, %s255
          %s257 = smul.addr %s256, 4
          %s258 = scalar_lea.vmem %s0, %s257
          %s259 = smul.u32 2, %s24
        $region44: #{tpu_custom_call.1} parent=39 // pred_fallthru
          _
      $region40: #{tpu_custom_call.1} parent=5 // pred_fallthru
        _
      %p260 = scmp.le.s32.totalorder 1, %s16
      %p261 = scmp.lt.s32.totalorder %s16, 3
      %p262 = pnand %p260, %p261
      %p263 = pneg %p262
      // Predicated region
      $region45: #{tpu_custom_call.1} parent=5 // pred_check
        _
      $region46: #{tpu_custom_call.1} parent=5 // pred_check_branch
        %265 = sbr.rel (%p262) target = $region48
      $region47: #{tpu_custom_call.1} parent=5 // pred_region
        %s266 = ssub.s32 %s16, 1
        %s267 = smul.u32 2, %s26
        %p268 = scmp.lt.s32.totalorder %s25, 1
        %s269 = scalar_select %p268, %s25, 1
        %p270 = scmp.lt.s32.totalorder %s267, 1
        %s271 = scalar_select %p270, %s267, 1
        %s272 = smul.addr %s269, 2
        %s273 = sadd.s32 %s271, %s272
        %s274 = smul.addr %s273, 4
        %s275 = scalar_lea.vmem %s0, %s274
        %p276 = pneg %p56
        %p277 = pneg %p53
        %p278 = pneg %p77
        %p279 = pneg %p74
        %p280 = pneg %p98
        %p281 = pneg %p95
        %p282 = pneg %p119
        %p283 = pneg %p116
        %p284 = pneg %p140
        %p285 = pneg %p137
        %p286 = pneg %p161
        %p287 = pneg %p158
        %p288 = pneg %p182
        %p289 = pneg %p179
        %p290 = pneg %p210
        %p291 = pneg %p207
        %s292 = sand.u32 %s197, 1
        %s293 = scalar_lea.sflag [#allocation3], %s292
        %s294 = sand.u32 %s197, 1
        %s295 = smul.addr %s294, 64
        %s296 = scalar_lea.vmem [#allocation2], %s295
        %s297 = smul.u32 2, %s26
        %p298 = scmp.lt.s32.totalorder %s25, 1
        %s299 = scalar_select %p298, %s25, 1
        %p300 = scmp.lt.s32.totalorder %s297, 1
        %s301 = scalar_select %p300, %s297, 1
        %s302 = smul.addr %s299, 2
        %s303 = sadd.s32 %s301, %s302
        %s304 = smul.addr %s303, 4
        %s305 = scalar_lea.vmem %s0, %s304
        %s306 = smul.u32 2, %s26
        %s307 = smul.u32 2, %s26
        %v308 = vld [vmem:[%s1] sm:$0xff]
        %v309 = vld [vmem:[%s1 + $0x8] sm:$0xff]
        %v310 = vld [vmem:[%s1 + $0x10] sm:$0xff]
        %v311 = vld [vmem:[%s1 + $0x18] sm:$0xff]
        %v312 = vld [vmem:[%s3] sm:$0xff]
        %v313 = vld [vmem:[%s3 + $0x8] sm:$0xff]
        %v314 = vld [vmem:[%s3 + $0x10] sm:$0xff]
        %v315 = vld [vmem:[%s3 + $0x18] sm:$0xff]
        %v316 = vld [vmem:[%s5] sm:$0xff]
        %v317 = vld [vmem:[%s5 + $0x8] sm:$0xff]
        %v318 = vld [vmem:[%s5 + $0x10] sm:$0xff]
        %v319 = vld [vmem:[%s5 + $0x18] sm:$0xff]
        %v320 = vld [vmem:[%s2] sm:$0xff]
        %v321 = vld [vmem:[%s2 + $0x8] sm:$0xff]
        %v322 = vld [vmem:[%s2 + $0x10] sm:$0xff]
        %v323 = vld [vmem:[%s2 + $0x18] sm:$0xff]
        %v324 = vld [vmem:[%s4] sm:$0xff]
        %v325 = vld [vmem:[%s4 + $0x8] sm:$0xff]
        %v326 = vld [vmem:[%s4 + $0x10] sm:$0xff]
        %v327 = vld [vmem:[%s4 + $0x18] sm:$0xff]
        %v328 = vld [vmem:[%s6] sm:$0xff]
        %v329 = vld [vmem:[%s6 + $0x8] sm:$0xff]
        %v330 = vld [vmem:[%s6 + $0x10] sm:$0xff]
        %v331 = vld [vmem:[%s6 + $0x18] sm:$0xff]
        %v332 = vld [vmem:[%s305] sm:$0xff]
        %334 = vset.pattern.permute.xlu0 0
        %335 = vperm.xlu0 %334, %v320
        %v336 = vpop.permute.xlu0 %335
        %339 = vset.pattern.permute.xlu0 0
        %340 = vperm.xlu0 %339, %v321
        %v341 = vpop.permute.xlu0 %340
        %344 = vset.pattern.permute.xlu0 0
        %345 = vperm.xlu0 %344, %v322
        %v346 = vpop.permute.xlu0 %345
        %349 = vset.pattern.permute.xlu0 0
        %350 = vperm.xlu0 %349, %v323
        %v351 = vpop.permute.xlu0 %350
        %v354 = vcombine.high %v332, %v332
        %vm355 = vcmask 31744
        %v357 = vsel %vm355, %v308, 0
        %v360 = vsel %vm355, %v309, 0
        %v363 = vsel %vm355, %v310, 0
        %v366 = vsel %vm355, %v311, 0
        %vm368 = vcmask 1043456
        %v369 = vsel %vm368, %v332, 0
        %v371 = vsel %vm368, %v354, 0
        %373 = vmatprep.subr.mxu0 %v371
        %374 = vmatpush1.msra.mxu0 %v369
        %375 = vmatprep.subr.mxu0 0.0
        %376 = vmatpush1.msra.mxu0 0.0
        %377 = vmatprep.subr.mxu0 0.0
        %378 = vmatpush1.msra.mxu0 0.0
        %379 = vmatprep.subr.mxu0 0.0
        %380 = vmatpush1.msra.mxu0 0.0
        %381 = vmatprep.subr.mxu0 0.0
        %382 = vmatpush1.msra.mxu0 0.0
        %383 = vmatprep.subr.mxu0 0.0
        %384 = vmatpush1.msra.mxu0 0.0
        %385 = vmatprep.subr.mxu0 0.0
        %386 = vmatpush1.msra.mxu0 0.0
        %387 = vmatprep.subr.mxu0 0.0
        %388 = vmatpush1.msra.mxu0 0.0
        %389 = vmatprep.subr.mxu0 0.0
        %390 = vmatpush1.msra.mxu0 0.0
        %391 = vmatprep.subr.mxu0 0.0
        %392 = vmatpush1.msra.mxu0 0.0
        %393 = vmatprep.subr.mxu0 0.0
        %394 = vmatpush1.msra.mxu0 0.0
        %395 = vmatprep.subr.mxu0 0.0
        %396 = vmatpush1.msra.mxu0 0.0
        %397 = vmatprep.subr.mxu0 0.0
        %398 = vmatpush1.msra.mxu0 0.0
        %399 = vmatprep.subr.mxu0 0.0
        %400 = vmatpush1.msra.mxu0 0.0
        %401 = vmatprep.subr.mxu0 0.0
        %402 = vmatpush1.msra.mxu0 0.0
        %403 = vmatprep.subr.mxu0 0.0
        %404 = vmatpush1.msra.mxu0 0.0
        %405 = vmatprep.subr.mxu0 0.0
        %406 = vmatpush1.msra.mxu0 0.0
        %407 = vmatprep.subr.mxu0 0.0
        %408 = vmatpush1.msra.mxu0 0.0
        %409 = vmatprep.subr.mxu0 0.0
        %410 = vmatpush1.msra.mxu0 0.0
        %411 = vmatprep.subr.mxu0 0.0
        %412 = vmatpush1.msra.mxu0 0.0
        %413 = vmatprep.subr.mxu0 0.0
        %414 = vmatpush1.msra.mxu0 0.0
        %415 = vmatprep.subr.mxu0 0.0
        %416 = vmatpush1.msra.mxu0 0.0
        %417 = vmatprep.subr.mxu0 0.0
        %418 = vmatpush1.msra.mxu0 0.0
        %419 = vmatprep.subr.mxu0 0.0
        %420 = vmatpush1.msra.mxu0 0.0
        %421 = vmatprep.subr.mxu0 0.0
        %422 = vmatpush1.msra.mxu0 0.0
        %423 = vmatprep.subr.mxu0 0.0
        %424 = vmatpush1.msra.mxu0 0.0
        %425 = vmatprep.subr.mxu0 0.0
        %426 = vmatpush1.msra.mxu0 0.0
        %427 = vmatprep.subr.mxu0 0.0
        %428 = vmatpush1.msra.mxu0 0.0
        %429 = vmatprep.subr.mxu0 0.0
        %430 = vmatpush1.msra.mxu0 0.0
        %431 = vmatprep.subr.mxu0 0.0
        %432 = vmatpush1.msra.mxu0 0.0
        %433 = vmatprep.subr.mxu0 0.0
        %434 = vmatpush1.msra.mxu0 0.0
        %435 = vmatprep.subr.mxu0 0.0
        %436 = vmatpush1.msra.mxu0 0.0
        %437 = vmatprep.mubr.f32.mxu0 0.0
        %438 = vmatmul.mubr.f32.gmra.mrb[0].mxu0 %v357
        %v439 = vpop.f32.mrb[0].mxu0
        %v440 = vadd.f32 %v336, %v439
        %v441 = vpop.f32.mrb[0].mxu0
        %v442 = vadd.f32 %v336, %v441
        %443 = vmatprep.mubr.f32.mxu0 0.0
        %444 = vmatmul.mubr.f32.gmra.mrb[0].mxu0 %v360
        %v445 = vpop.f32.mrb[0].mxu0
        %v446 = vadd.f32 %v341, %v445
        %v447 = vpop.f32.mrb[0].mxu0
        %v448 = vadd.f32 %v341, %v447
        %449 = vmatprep.mubr.f32.mxu0 0.0
        %450 = vmatmul.mubr.f32.gmra.mrb[0].mxu0 %v363
        %v451 = vpop.f32.mrb[0].mxu0
        %v452 = vadd.f32 %v346, %v451
        %v453 = vpop.f32.mrb[0].mxu0
        %v454 = vadd.f32 %v346, %v453
        %455 = vmatprep.mubr.f32.mxu0 0.0
        %456 = vmatmul.mubr.f32.gmra.mrb[0].mxu0 %v366
        %v457 = vpop.f32.mrb[0].mxu0
        %v458 = vadd.f32 %v351, %v457
        %v459 = vpop.f32.mrb[0].mxu0
        %v460 = vadd.f32 %v351, %v459
        %461 = vdwg.mxu0
        %v462 = vmax.f32 %v440, 0.0
        %v463 = vmax.f32 %v442, 0.0
        %v464 = vmax.f32 %v446, 0.0
        %v465 = vmax.f32 %v448, 0.0
        %v466 = vmax.f32 %v452, 0.0
        %v467 = vmax.f32 %v454, 0.0
        %v468 = vmax.f32 %v458, 0.0
        %v469 = vmax.f32 %v460, 0.0
        %471 = vset.pattern.permute.xlu0 0
        %472 = vperm.xlu0 %471, %v324
        %v473 = vpop.permute.xlu0 %472
        %476 = vset.pattern.permute.xlu0 0
        %477 = vperm.xlu0 %476, %v325
        %v478 = vpop.permute.xlu0 %477
        %481 = vset.pattern.permute.xlu0 0
        %482 = vperm.xlu0 %481, %v326
        %v483 = vpop.permute.xlu0 %482
        %486 = vset.pattern.permute.xlu0 0
        %487 = vperm.xlu0 %486, %v327
        %v488 = vpop.permute.xlu0 %487
        %vm490 = vcmask 261120
        %v492 = vsel %vm490, %v312, 0
        %v495 = vsel %vm490, %v313, 0
        %v498 = vsel %vm490, %v314, 0
        %v501 = vsel %vm490, %v315, 0
        %503 = vmatprep.subr.mxu0 %v463
        %504 = vmatpush1.msra.mxu0 %v462
        %505 = vmatprep.subr.mxu0 %v465
        %506 = vmatpush1.msra.mxu0 %v464
        %507 = vmatprep.subr.mxu0 %v467
        %508 = vmatpush1.msra.mxu0 %v466
        %509 = vmatprep.subr.mxu0 %v469
        %510 = vmatpush1.msra.mxu0 %v468
        %511 = vmatprep.subr.mxu0 0.0
        %512 = vmatpush1.msra.mxu0 0.0
        %513 = vmatprep.subr.mxu0 0.0
        %514 = vmatpush1.msra.mxu0 0.0
        %515 = vmatprep.subr.mxu0 0.0
        %516 = vmatpush1.msra.mxu0 0.0
        %517 = vmatprep.subr.mxu0 0.0
        %518 = vmatpush1.msra.mxu0 0.0
        %519 = vmatprep.subr.mxu0 0.0
        %520 = vmatpush1.msra.mxu0 0.0
        %521 = vmatprep.subr.mxu0 0.0
        %522 = vmatpush1.msra.mxu0 0.0
        %523 = vmatprep.subr.mxu0 0.0
        %524 = vmatpush1.msra.mxu0 0.0
        %525 = vmatprep.subr.mxu0 0.0
        %526 = vmatpush1.msra.mxu0 0.0
        %527 = vmatprep.subr.mxu0 0.0
        %528 = vmatpush1.msra.mxu0 0.0
        %529 = vmatprep.subr.mxu0 0.0
        %530 = vmatpush1.msra.mxu0 0.0
        %531 = vmatprep.subr.mxu0 0.0
        %532 = vmatpush1.msra.mxu0 0.0
        %533 = vmatprep.subr.mxu0 0.0
        %534 = vmatpush1.msra.mxu0 0.0
        %535 = vmatprep.subr.mxu0 0.0
        %536 = vmatpush1.msra.mxu0 0.0
        %537 = vmatprep.subr.mxu0 0.0
        %538 = vmatpush1.msra.mxu0 0.0
        %539 = vmatprep.subr.mxu0 0.0
        %540 = vmatpush1.msra.mxu0 0.0
        %541 = vmatprep.subr.mxu0 0.0
        %542 = vmatpush1.msra.mxu0 0.0
        %543 = vmatprep.subr.mxu0 0.0
        %544 = vmatpush1.msra.mxu0 0.0
        %545 = vmatprep.subr.mxu0 0.0
        %546 = vmatpush1.msra.mxu0 0.0
        %547 = vmatprep.subr.mxu0 0.0
        %548 = vmatpush1.msra.mxu0 0.0
        %549 = vmatprep.subr.mxu0 0.0
        %550 = vmatpush1.msra.mxu0 0.0
        %551 = vmatprep.subr.mxu0 0.0
        %552 = vmatpush1.msra.mxu0 0.0
        %553 = vmatprep.subr.mxu0 0.0
        %554 = vmatpush1.msra.mxu0 0.0
        %555 = vmatprep.subr.mxu0 0.0
        %556 = vmatpush1.msra.mxu0 0.0
        %557 = vmatprep.subr.mxu0 0.0
        %558 = vmatpush1.msra.mxu0 0.0
        %559 = vmatprep.subr.mxu0 0.0
        %560 = vmatpush1.msra.mxu0 0.0
        %561 = vmatprep.subr.mxu0 0.0
        %562 = vmatpush1.msra.mxu0 0.0
        %563 = vmatprep.subr.mxu0 0.0
        %564 = vmatpush1.msra.mxu0 0.0
        %565 = vmatprep.subr.mxu0 0.0
        %566 = vmatpush1.msra.mxu0 0.0
        %567 = vmatprep.mubr.f32.mxu0 0.0
        %568 = vmatmul.mubr.f32.gmra.mrb[0].mxu0 %v492
        %v569 = vpop.f32.mrb[0].mxu0
        %v570 = vadd.f32 %v473, %v569
        %v571 = vpop.f32.mrb[0].mxu0
        %v572 = vadd.f32 %v473, %v571
        %573 = vmatprep.mubr.f32.mxu0 0.0
        %574 = vmatmul.mubr.f32.gmra.mrb[0].mxu0 %v495
        %v575 = vpop.f32.mrb[0].mxu0
        %v576 = vadd.f32 %v478, %v575
        %v577 = vpop.f32.mrb[0].mxu0
        %v578 = vadd.f32 %v478, %v577
        %579 = vmatprep.mubr.f32.mxu0 0.0
        %580 = vmatmul.mubr.f32.gmra.mrb[0].mxu0 %v498
        %v581 = vpop.f32.mrb[0].mxu0
        %v582 = vadd.f32 %v483, %v581
        %v583 = vpop.f32.mrb[0].mxu0
        %v584 = vadd.f32 %v483, %v583
        %585 = vmatprep.mubr.f32.mxu0 0.0
        %586 = vmatmul.mubr.f32.gmra.mrb[0].mxu0 %v501
        %v587 = vpop.f32.mrb[0].mxu0
        %v588 = vadd.f32 %v488, %v587
        %v589 = vpop.f32.mrb[0].mxu0
        %v590 = vadd.f32 %v488, %v589
        %591 = vdwg.mxu0
        %v592 = vmax.f32 %v570, 0.0
        %v593 = vmax.f32 %v572, 0.0
        %v594 = vmax.f32 %v576, 0.0
        %v595 = vmax.f32 %v578, 0.0
        %v596 = vmax.f32 %v582, 0.0
        %v597 = vmax.f32 %v584, 0.0
        %v598 = vmax.f32 %v588, 0.0
        %v599 = vmax.f32 %v590, 0.0
        %601 = vset.pattern.permute.xlu0 0
        %602 = vperm.xlu0 %601, %v328
        %v603 = vpop.permute.xlu0 %602
        %606 = vset.pattern.permute.xlu0 0
        %607 = vperm.xlu0 %606, %v329
        %v608 = vpop.permute.xlu0 %607
        %611 = vset.pattern.permute.xlu0 0
        %612 = vperm.xlu0 %611, %v330
        %v613 = vpop.permute.xlu0 %612
        %616 = vset.pattern.permute.xlu0 0
        %617 = vperm.xlu0 %616, %v331
        %v618 = vpop.permute.xlu0 %617
        %v621 = vsel %vm490, %v316, 0
        %v624 = vsel %vm490, %v317, 0
        %v627 = vsel %vm490, %v318, 0
        %v630 = vsel %vm490, %v319, 0
        %632 = vmatprep.subr.mxu0 %v593
        %633 = vmatpush1.msra.mxu0 %v592
        %634 = vmatprep.subr.mxu0 %v595
        %635 = vmatpush1.msra.mxu0 %v594
        %636 = vmatprep.subr.mxu0 %v597
        %637 = vmatpush1.msra.mxu0 %v596
        %638 = vmatprep.subr.mxu0 %v599
        %639 = vmatpush1.msra.mxu0 %v598
        %640 = vmatprep.subr.mxu0 0.0
        %641 = vmatpush1.msra.mxu0 0.0
        %642 = vmatprep.subr.mxu0 0.0
        %643 = vmatpush1.msra.mxu0 0.0
        %644 = vmatprep.subr.mxu0 0.0
        %645 = vmatpush1.msra.mxu0 0.0
        %646 = vmatprep.subr.mxu0 0.0
        %647 = vmatpush1.msra.mxu0 0.0
        %648 = vmatprep.subr.mxu0 0.0
        %649 = vmatpush1.msra.mxu0 0.0
        %650 = vmatprep.subr.mxu0 0.0
        %651 = vmatpush1.msra.mxu0 0.0
        %652 = vmatprep.subr.mxu0 0.0
        %653 = vmatpush1.msra.mxu0 0.0
        %654 = vmatprep.subr.mxu0 0.0
        %655 = vmatpush1.msra.mxu0 0.0
        %656 = vmatprep.subr.mxu0 0.0
        %657 = vmatpush1.msra.mxu0 0.0
        %658 = vmatprep.subr.mxu0 0.0
        %659 = vmatpush1.msra.mxu0 0.0
        %660 = vmatprep.subr.mxu0 0.0
        %661 = vmatpush1.msra.mxu0 0.0
        %662 = vmatprep.subr.mxu0 0.0
        %663 = vmatpush1.msra.mxu0 0.0
        %664 = vmatprep.subr.mxu0 0.0
        %665 = vmatpush1.msra.mxu0 0.0
        %666 = vmatprep.subr.mxu0 0.0
        %667 = vmatpush1.msra.mxu0 0.0
        %668 = vmatprep.subr.mxu0 0.0
        %669 = vmatpush1.msra.mxu0 0.0
        %670 = vmatprep.subr.mxu0 0.0
        %671 = vmatpush1.msra.mxu0 0.0
        %672 = vmatprep.subr.mxu0 0.0
        %673 = vmatpush1.msra.mxu0 0.0
        %674 = vmatprep.subr.mxu0 0.0
        %675 = vmatpush1.msra.mxu0 0.0
        %676 = vmatprep.subr.mxu0 0.0
        %677 = vmatpush1.msra.mxu0 0.0
        %678 = vmatprep.subr.mxu0 0.0
        %679 = vmatpush1.msra.mxu0 0.0
        %680 = vmatprep.subr.mxu0 0.0
        %681 = vmatpush1.msra.mxu0 0.0
        %682 = vmatprep.subr.mxu0 0.0
        %683 = vmatpush1.msra.mxu0 0.0
        %684 = vmatprep.subr.mxu0 0.0
        %685 = vmatpush1.msra.mxu0 0.0
        %686 = vmatprep.subr.mxu0 0.0
        %687 = vmatpush1.msra.mxu0 0.0
        %688 = vmatprep.subr.mxu0 0.0
        %689 = vmatpush1.msra.mxu0 0.0
        %690 = vmatprep.subr.mxu0 0.0
        %691 = vmatpush1.msra.mxu0 0.0
        %692 = vmatprep.subr.mxu0 0.0
        %693 = vmatpush1.msra.mxu0 0.0
        %694 = vmatprep.subr.mxu0 0.0
        %695 = vmatpush1.msra.mxu0 0.0
        %696 = vmatprep.mubr.f32.mxu0 0.0
        %697 = vmatmul.mubr.f32.gmra.mrb[0].mxu0 %v621
        %v698 = vpop.f32.mrb[0].mxu0
        %v699 = vadd.f32 %v603, %v698
        %v700 = vpop.f32.mrb[0].mxu0
        %v701 = vadd.f32 %v603, %v700
        %702 = vmatprep.mubr.f32.mxu0 0.0
        %703 = vmatmul.mubr.f32.gmra.mrb[0].mxu0 %v624
        %v704 = vpop.f32.mrb[0].mxu0
        %v705 = vadd.f32 %v608, %v704
        %v706 = vpop.f32.mrb[0].mxu0
        %v707 = vadd.f32 %v608, %v706
        %708 = vmatprep.mubr.f32.mxu0 0.0
        %709 = vmatmul.mubr.f32.gmra.mrb[0].mxu0 %v627
        %v710 = vpop.f32.mrb[0].mxu0
        %v711 = vadd.f32 %v613, %v710
        %v712 = vpop.f32.mrb[0].mxu0
        %v713 = vadd.f32 %v613, %v712
        %714 = vmatprep.mubr.f32.mxu0 0.0
        %715 = vmatmul.mubr.f32.gmra.mrb[0].mxu0 %v630
        %v716 = vpop.f32.mrb[0].mxu0
        %v717 = vadd.f32 %v618, %v716
        %v718 = vpop.f32.mrb[0].mxu0
        %v719 = vadd.f32 %v618, %v718
        %720 = vdwg.mxu0
        %v721 = vmax.f32 %v699, 0.0
        %v722 = vmax.f32 %v701, 0.0
        %v723 = vmax.f32 %v705, 0.0
        %v724 = vmax.f32 %v707, 0.0
        %v725 = vmax.f32 %v711, 0.0
        %v726 = vmax.f32 %v713, 0.0
        %v727 = vmax.f32 %v717, 0.0
        %v728 = vmax.f32 %v719, 0.0
        %729 = vst [vmem:[%s296] sm:$0xff] %v721
        %730 = vst [vmem:[%s296 + $0x8] sm:$0xff] %v722
        %731 = vst [vmem:[%s296 + $0x10] sm:$0xff] %v723
        %732 = vst [vmem:[%s296 + $0x18] sm:$0xff] %v724
        %733 = vst [vmem:[%s296 + $0x20] sm:$0xff] %v725
        %734 = vst [vmem:[%s296 + $0x28] sm:$0xff] %v726
        %735 = vst [vmem:[%s296 + $0x30] sm:$0xff] %v727
        %736 = vst [vmem:[%s296 + $0x38] sm:$0xff] %v728
        %s737 = sand.u32 %s197, 1
        %s738 = scalar_lea.sflag [#allocation3], %s737
        %s739 = sand.u32 %s197, 1
        %s740 = smul.addr %s739, 64
        %s741 = scalar_lea.vmem [#allocation2], %s740
        // Predicated region
        $region49: #{tpu_custom_call.1} parent=47 // pred_check
          %p742 = pneg %p207
        $region50: #{tpu_custom_call.1} parent=47 // pred_check_branch
          %744 = sbr.rel (%p742) target = $region52
        $region51: #{tpu_custom_call.1} parent=47 // pred_region
          %s745 = smul.u32 2, %s26
          %s747 = ssub.s32 1024, 1024
          %748 = vsyncadd %s738, %s747
          %s749 = smul.addr %s25, 8
          %s750 = sadd.s32 %s745, %s749
          %s751 = smul.addr %s750, 128
          %s752 = scalar_lea.hbm %s7, %s751
          %s753 = sshll.u32 %s741, 4
          %s754 = int_to_ptr.vmem [resolvable:$true] %s753
          %759 = dma.vmem_to_hbm [thread:$0]  %s754, 1024, %s752, %s738, 256, 256, 16
        $region52: #{tpu_custom_call.1} parent=47 // pred_fallthru
          _
      $region48: #{tpu_custom_call.1} parent=5 // pred_fallthru
        _
      %p760 = scmp.le.s32.totalorder 2, %s16
      // Predicated region
      $region53: #{tpu_custom_call.1} parent=5 // pred_check
        %p761 = pneg %p760
      $region54: #{tpu_custom_call.1} parent=5 // pred_check_branch
        %763 = sbr.rel (%p761) target = $region56
      $region55: #{tpu_custom_call.1} parent=5 // pred_region
        %s764 = ssub.s32 %s16, 2
        // Predicated region
        $region57: #{tpu_custom_call.1} parent=55 // pred_check
          %p765 = pneg %p213
        $region58: #{tpu_custom_call.1} parent=55 // pred_check_branch
          %767 = sbr.rel (%p765) target = $region60
        $region59: #{tpu_custom_call.1} parent=55 // pred_region
          %s768 = sand.u32 %s198, 1
          %s769 = scalar_lea.sflag [#allocation3], %s768
          %s770 = sand.u32 %s198, 1
          %s771 = smul.addr %s770, 64
          %s772 = scalar_lea.vmem [#allocation2], %s771
          %773 = dma.done %s769, 1024
        $region60: #{tpu_custom_call.1} parent=55 // pred_fallthru
          _
      $region56: #{tpu_custom_call.1} parent=5 // pred_fallthru
        _
    $region6: #{tpu_custom_call.1} parent=1 // loop_footer
      %s20 = sadd.s32 1, %s16
    $region7: #{tpu_custom_call.1} parent=1 // loop_footer_branch
      %15 = sbr.rel target = $region3
    $region8: #{tpu_custom_call.1} parent=1 // loop_exit
      _
    %774 = vsyncpa [#allocation3], 1
    %s775 = scalar_lea.sflag [#allocation3], 1
    %776 = vsyncpa %s775, 1

// kernel: tpu_custom_call.1
$region0: #{tpu_custom_call.1}
  #allocation0 [shape = 'u32[]', space=smem, size = 0x4, offset = 0x4, fixed_abs, tag = 'smem constant byte address 0x4 - core index']
  #allocation1 [shape = 'u32[144,128]{1,0:T(1,128)}', space=vmem, size = 0x12000, scoped, tag = 'internal scratch']
  %s0 = inlined_call_operand.vmem [shape: f32[2,4,256], index: 0, kind: input, shape index: {}]
  %s1 = inlined_call_operand.vmem [shape: f32[32,4], index: 1, kind: input, shape index: {}]
  %s2 = inlined_call_operand.vmem [shape: f32[32,1], index: 2, kind: input, shape index: {}]
  %s3 = inlined_call_operand.vmem [shape: f32[32,32], index: 3, kind: input, shape index: {}]
  %s4 = inlined_call_operand.vmem [shape: f32[32,1], index: 4, kind: input, shape index: {}]
  %s5 = inlined_call_operand.vmem [shape: f32[32,32], index: 5, kind: input, shape index: {}]
  %s6 = inlined_call_operand.vmem [shape: f32[32,1], index: 6, kind: input, shape index: {}]
  %s7 = inlined_call_operand.hbm [shape: f32[2,32,256], index: 7, kind: output, shape index: {}]
  %s8 = sld [smem:[#allocation0]]
  $region61: #{tpu_custom_call.1} parent=0
    _
  %s10 = ssub.s32 1, %s8
  %s11 = scalar_select 0, %s10, %s8
  $region1: #{tpu_custom_call.1} parent=0
    #allocation2 [shape = 'u8[65536]{0}', space=vmem, size = 0x10000, scoped, tag = 'output window, operand 0']
    #allocation3 [shape = 's32[2]{0}', space=sflag, size = 0x8, scoped, tag = 'scoped memory for tpu_custom_call.1']
    %12 = vsyncpa [#allocation3], 0
    %s13 = scalar_lea.sflag [#allocation3], 1
    %14 = vsyncpa %s13, 0
    loop: start=0, step=1, limit=4
    $region2: #{tpu_custom_call.1} parent=1 // loop_pre_header
      _
    $region3: #{tpu_custom_call.1} parent=1 // loop_header
      %s16 = sphi 0, %s20
      %p17 = scmp.ge.s32.totalorder %s16, 4
      %s23 = sphi 0, %s35
      %s24 = sphi 0, %s31
      %s25 = sphi 0, %s23
      %s26 = sphi 0, %s24
      %s27 = sphi 0, %s25
      %s28 = sphi 0, %s26
      %s40 = sphi 0, %s42
      %s43 = sphi 0, %s40
      %s44 = sphi 0, %s43
      %s60 = sphi 0, %s44
      %s64 = sphi 0, %s64
      %s66 = sphi 0, %s64
      %s67 = sphi 0, %s66
      %s81 = sphi 0, %s67
      %s85 = sphi 0, %s85
      %s87 = sphi 0, %s85
      %s88 = sphi 0, %s87
      %s102 = sphi 0, %s88
      %s106 = sphi 0, %s106
      %s108 = sphi 0, %s106
      %s109 = sphi 0, %s108
      %s123 = sphi 0, %s109
      %s127 = sphi 0, %s127
      %s129 = sphi 0, %s127
      %s130 = sphi 0, %s129
      %s144 = sphi 0, %s130
      %s148 = sphi 0, %s148
      %s150 = sphi 0, %s148
      %s151 = sphi 0, %s150
      %s165 = sphi 0, %s151
      %s169 = sphi 0, %s169
      %s171 = sphi 0, %s169
      %s172 = sphi 0, %s171
      %s186 = sphi 0, %s172
      %s194 = sphi 0, %s196
      %s197 = sphi 0, %s194
      %s198 = sphi 0, %s197
      %s214 = sphi 0, %s198
    $region4: #{tpu_custom_call.1} parent=1 // loop_header_branch
      %19 = sbr.rel (%p17) target = $region8
    $region5: #{tpu_custom_call.1} parent=1 // loop_body
      %s21 = ssub.s32 %s16, 1
      %s22 = ssub.s32 %s16, 2
      %s29 = sadd.s32 1, %s24
      %p30 = scmp.ge.s32.totalorder %s29, 1
      %s31 = scalar_select %p30, 0, %s29
      %s32 = sadd.s32 1, %s23
      %s33 = scalar_select %p30, %s32, %s23
      %p34 = scmp.ge.s32.totalorder %s33, 2
      %s35 = scalar_select %p34, 0, %s33
      %s36 = ssub.s32 %s23, %s35
      %s37 = ssub.s32 %s24, %s31
      %s38 = sor.u32 %s36, %s37
      %p39 = scmp.eq.s32.totalorder %s38, 0
      %s41 = sadd.s32 %s40, 1
      %s42 = scalar_select %p39, %s40, %s41
      %p45 = pneg %p39
      %p46 = scmp.eq.s32.totalorder %s16, 1
      %p47 = por %p45, %p46
      %p48 = scmp.ne.s32.totalorder %s40, %s43
      %p49 = scmp.eq.s32.totalorder %s16, 0
      %p50 = por %p48, %p49
      %p51 = scmp.ne.s32.totalorder %s40, %s43
      %p52 = scmp.eq.s32.totalorder %s21, 1
      %p53 = por %p51, %p52
      %p54 = scmp.ne.s32.totalorder %s43, %s44
      %p55 = scmp.eq.s32.totalorder %s21, 0
      %p56 = por %p54, %p55
      %p57 = scmp.ne.s32.totalorder %s43, %s44
      %p58 = scmp.eq.s32.totalorder %s22, 1
      %p59 = por %p57, %p58
      %p61 = scmp.ne.s32.totalorder %s44, %s60
      %p62 = scmp.eq.s32.totalorder %s22, 0
      %p63 = por %p61, %p62
      %s65 = sadd.s32 %s64, 1
      %p68 = scmp.eq.s32.totalorder %s16, 1
      %p69 = scmp.ne.s32.totalorder %s64, %s66
      %p70 = scmp.eq.s32.totalorder %s16, 0
      %p71 = por %p69, %p70
      %p72 = scmp.ne.s32.totalorder %s64, %s66
      %p73 = scmp.eq.s32.totalorder %s21, 1
      %p74 = por %p72, %p73
      %p75 = scmp.ne.s32.totalorder %s66, %s67
      %p76 = scmp.eq.s32.totalorder %s21, 0
      %p77 = por %p75, %p76
      %p78 = scmp.ne.s32.totalorder %s66, %s67
      %p79 = scmp.eq.s32.totalorder %s22, 1
      %p80 = por %p78, %p79
      %p82 = scmp.ne.s32.totalorder %s67, %s81
      %p83 = scmp.eq.s32.totalorder %s22, 0
      %p84 = por %p82, %p83
      %s86 = sadd.s32 %s85, 1
      %p89 = scmp.eq.s32.totalorder %s16, 1
      %p90 = scmp.ne.s32.totalorder %s85, %s87
      %p91 = scmp.eq.s32.totalorder %s16, 0
      %p92 = por %p90, %p91
      %p93 = scmp.ne.s32.totalorder %s85, %s87
      %p94 = scmp.eq.s32.totalorder %s21, 1
      %p95 = por %p93, %p94
      %p96 = scmp.ne.s32.totalorder %s87, %s88
      %p97 = scmp.eq.s32.totalorder %s21, 0
      %p98 = por %p96, %p97
      %p99 = scmp.ne.s32.totalorder %s87, %s88
      %p100 = scmp.eq.s32.totalorder %s22, 1
      %p101 = por %p99, %p100
      %p103 = scmp.ne.s32.totalorder %s88, %s102
      %p104 = scmp.eq.s32.totalorder %s22, 0
      %p105 = por %p103, %p104
      %s107 = sadd.s32 %s106, 1
      %p110 = scmp.eq.s32.totalorder %s16, 1
      %p111 = scmp.ne.s32.totalorder %s106, %s108
      %p112 = scmp.eq.s32.totalorder %s16, 0
      %p113 = por %p111, %p112
      %p114 = scmp.ne.s32.totalorder %s106, %s108
      %p115 = scmp.eq.s32.totalorder %s21, 1
      %p116 = por %p114, %p115
      %p117 = scmp.ne.s32.totalorder %s108, %s109
      %p118 = scmp.eq.s32.totalorder %s21, 0
      %p119 = por %p117, %p118
      %p120 = scmp.ne.s32.totalorder %s108, %s109
      %p121 = scmp.eq.s32.totalorder %s22, 1
      %p122 = por %p120, %p121
      %p124 = scmp.ne.s32.totalorder %s109, %s123
      %p125 = scmp.eq.s32.totalorder %s22, 0
      %p126 = por %p124, %p125
      %s128 = sadd.s32 %s127, 1
      %p131 = scmp.eq.s32.totalorder %s16, 1
      %p132 = scmp.ne.s32.totalorder %s127, %s129
      %p133 = scmp.eq.s32.totalorder %s16, 0
      %p134 = por %p132, %p133
      %p135 = scmp.ne.s32.totalorder %s127, %s129
      %p136 = scmp.eq.s32.totalorder %s21, 1
      %p137 = por %p135, %p136
      %p138 = scmp.ne.s32.totalorder %s129, %s130
      %p139 = scmp.eq.s32.totalorder %s21, 0
      %p140 = por %p138, %p139
      %p141 = scmp.ne.s32.totalorder %s129, %s130
      %p142 = scmp.eq.s32.totalorder %s22, 1
      %p143 = por %p141, %p142
      %p145 = scmp.ne.s32.totalorder %s130, %s144
      %p146 = scmp.eq.s32.totalorder %s22, 0
      %p147 = por %p145, %p146
      %s149 = sadd.s32 %s148, 1
      %p152 = scmp.eq.s32.totalorder %s16, 1
      %p153 = scmp.ne.s32.totalorder %s148, %s150
      %p154 = scmp.eq.s32.totalorder %s16, 0
      %p155 = por %p153, %p154
      %p156 = scmp.ne.s32.totalorder %s148, %s150
      %p157 = scmp.eq.s32.totalorder %s21, 1
      %p158 = por %p156, %p157
      %p159 = scmp.ne.s32.totalorder %s150, %s151
      %p160 = scmp.eq.s32.totalorder %s21, 0
      %p161 = por %p159, %p160
      %p162 = scmp.ne.s32.totalorder %s150, %s151
      %p163 = scmp.eq.s32.totalorder %s22, 1
      %p164 = por %p162, %p163
      %p166 = scmp.ne.s32.totalorder %s151, %s165
      %p167 = scmp.eq.s32.totalorder %s22, 0
      %p168 = por %p166, %p167
      %s170 = sadd.s32 %s169, 1
      %p173 = scmp.eq.s32.totalorder %s16, 1
      %p174 = scmp.ne.s32.totalorder %s169, %s171
      %p175 = scmp.eq.s32.totalorder %s16, 0
      %p176 = por %p174, %p175
      %p177 = scmp.ne.s32.totalorder %s169, %s171
      %p178 = scmp.eq.s32.totalorder %s21, 1
      %p179 = por %p177, %p178
      %p180 = scmp.ne.s32.totalorder %s171, %s172
      %p181 = scmp.eq.s32.totalorder %s21, 0
      %p182 = por %p180, %p181
      %p183 = scmp.ne.s32.totalorder %s171, %s172
      %p184 = scmp.eq.s32.totalorder %s22, 1
      %p185 = por %p183, %p184
      %p187 = scmp.ne.s32.totalorder %s172, %s186
      %p188 = scmp.eq.s32.totalorder %s22, 0
      %p189 = por %p187, %p188
      %s190 = ssub.s32 %s23, %s35
      %s191 = ssub.s32 %s24, %s31
      %s192 = sor.u32 %s190, %s191
      %p193 = scmp.eq.s32.totalorder %s192, 0
      %s195 = sadd.s32 %s194, 1
      %s196 = scalar_select %p193, %s194, %s195
      %p199 = pneg %p193
      %p200 = scmp.eq.s32.totalorder %s16, 1
      %p201 = por %p199, %p200
      %p202 = scmp.ne.s32.totalorder %s194, %s197
      %p203 = scmp.eq.s32.totalorder %s16, 0
      %p204 = por %p202, %p203
      %p205 = scmp.ne.s32.totalorder %s194, %s197
      %p206 = scmp.eq.s32.totalorder %s21, 1
      %p207 = por %p205, %p206
      %p208 = scmp.ne.s32.totalorder %s197, %s198
      %p209 = scmp.eq.s32.totalorder %s21, 0
      %p210 = por %p208, %p209
      %p211 = scmp.ne.s32.totalorder %s197, %s198
      %p212 = scmp.eq.s32.totalorder %s22, 1
      %p213 = por %p211, %p212
      %p215 = scmp.ne.s32.totalorder %s198, %s214
      %p216 = scmp.eq.s32.totalorder %s22, 0
      %p217 = por %p215, %p216
      %p218 = scmp.le.s32.totalorder 1, %s16
      %p219 = scmp.lt.s32.totalorder %s16, 3
      %p220 = pnand %p218, %p219
      %p221 = pneg %p220
      // Predicated region
      $region9: #{tpu_custom_call.1} parent=5 // pred_check
        _
      $region10: #{tpu_custom_call.1} parent=5 // pred_check_branch
        %223 = sbr.rel (%p220) target = $region12
      $region11: #{tpu_custom_call.1} parent=5 // pred_region
        %s224 = ssub.s32 %s16, 1
        // Predicated region
        $region13: #{tpu_custom_call.1} parent=11 // pred_check
          %p225 = pneg %p77
        $region14: #{tpu_custom_call.1} parent=11 // pred_check_branch
          %227 = sbr.rel (%p225) target = $region16
        $region15: #{tpu_custom_call.1} parent=11 // pred_region
          _
        $region16: #{tpu_custom_call.1} parent=11 // pred_fallthru
          _
        // Predicated region
        $region17: #{tpu_custom_call.1} parent=11 // pred_check
          %p228 = pneg %p98
        $region18: #{tpu_custom_call.1} parent=11 // pred_check_branch
          %230 = sbr.rel (%p228) target = $region20
        $region19: #{tpu_custom_call.1} parent=11 // pred_region
          _
        $region20: #{tpu_custom_call.1} parent=11 // pred_fallthru
          _
        // Predicated region
        $region21: #{tpu_custom_call.1} parent=11 // pred_check
          %p231 = pneg %p119
        $region22: #{tpu_custom_call.1} parent=11 // pred_check_branch
          %233 = sbr.rel (%p231) target = $region24
        $region23: #{tpu_custom_call.1} parent=11 // pred_region
          _
        $region24: #{tpu_custom_call.1} parent=11 // pred_fallthru
          _
        // Predicated region
        $region25: #{tpu_custom_call.1} parent=11 // pred_check
          %p234 = pneg %p140
        $region26: #{tpu_custom_call.1} parent=11 // pred_check_branch
          %236 = sbr.rel (%p234) target = $region28
        $region27: #{tpu_custom_call.1} parent=11 // pred_region
          _
        $region28: #{tpu_custom_call.1} parent=11 // pred_fallthru
          _
        // Predicated region
        $region29: #{tpu_custom_call.1} parent=11 // pred_check
          %p237 = pneg %p161
        $region30: #{tpu_custom_call.1} parent=11 // pred_check_branch
          %239 = sbr.rel (%p237) target = $region32
        $region31: #{tpu_custom_call.1} parent=11 // pred_region
          _
        $region32: #{tpu_custom_call.1} parent=11 // pred_fallthru
          _
        // Predicated region
        $region33: #{tpu_custom_call.1} parent=11 // pred_check
          %p240 = pneg %p182
        $region34: #{tpu_custom_call.1} parent=11 // pred_check_branch
          %242 = sbr.rel (%p240) target = $region36
        $region35: #{tpu_custom_call.1} parent=11 // pred_region
          _
        $region36: #{tpu_custom_call.1} parent=11 // pred_fallthru
          _
      $region12: #{tpu_custom_call.1} parent=5 // pred_fallthru
        _
      %p243 = scmp.lt.s32.totalorder %s16, 2
      // Predicated region
      $region37: #{tpu_custom_call.1} parent=5 // pred_check
        %p244 = pneg %p243
      $region38: #{tpu_custom_call.1} parent=5 // pred_check_branch
        %246 = sbr.rel (%p244) target = $region40
      $region39: #{tpu_custom_call.1} parent=5 // pred_region
        // Predicated region
        $region41: #{tpu_custom_call.1} parent=39 // pred_check
          %p247 = pneg %p50
        $region42: #{tpu_custom_call.1} parent=39 // pred_check_branch
          %249 = sbr.rel (%p247) target = $region44
        $region43: #{tpu_custom_call.1} parent=39 // pred_region
          %s250 = smul.u32 2, %s24
          %p251 = scmp.lt.s32.totalorder %s23, 1
          %s252 = scalar_select %p251, %s23, 1
          %p253 = scmp.lt.s32.totalorder %s250, 1
          %s254 = scalar_select %p253, %s250, 1
          %s255 = smul.addr %s252, 2
          %s256 = sadd.s32 %s254, %s255
          %s257 = smul.addr %s256, 4
          %s258 = scalar_lea.vmem %s0, %s257
          %s259 = smul.u32 2, %s24
        $region44: #{tpu_custom_call.1} parent=39 // pred_fallthru
          _
      $region40: #{tpu_custom_call.1} parent=5 // pred_fallthru
        _
      %p260 = scmp.le.s32.totalorder 1, %s16
      %p261 = scmp.lt.s32.totalorder %s16, 3
      %p262 = pnand %p260, %p261
      %p263 = pneg %p262
      // Predicated region
      $region45: #{tpu_custom_call.1} parent=5 // pred_check
        _
      $region46: #{tpu_custom_call.1} parent=5 // pred_check_branch
        %265 = sbr.rel (%p262) target = $region48
      $region47: #{tpu_custom_call.1} parent=5 // pred_region
        %s266 = ssub.s32 %s16, 1
        %s267 = smul.u32 2, %s26
        %p268 = scmp.lt.s32.totalorder %s25, 1
        %s269 = scalar_select %p268, %s25, 1
        %p270 = scmp.lt.s32.totalorder %s267, 1
        %s271 = scalar_select %p270, %s267, 1
        %s272 = smul.addr %s269, 2
        %s273 = sadd.s32 %s271, %s272
        %s274 = smul.addr %s273, 4
        %s275 = scalar_lea.vmem %s0, %s274
        %p276 = pneg %p56
        %p277 = pneg %p53
        %p278 = pneg %p77
        %p279 = pneg %p74
        %p280 = pneg %p98
        %p281 = pneg %p95
        %p282 = pneg %p119
        %p283 = pneg %p116
        %p284 = pneg %p140
        %p285 = pneg %p137
        %p286 = pneg %p161
        %p287 = pneg %p158
        %p288 = pneg %p182
        %p289 = pneg %p179
        %p290 = pneg %p210
        %p291 = pneg %p207
        %s292 = sand.u32 %s197, 1
        %s293 = scalar_lea.sflag [#allocation3], %s292
        %s294 = sand.u32 %s197, 1
        %s295 = smul.addr %s294, 64
        %s296 = scalar_lea.vmem [#allocation2], %s295
        %s297 = smul.u32 2, %s26
        %p298 = scmp.lt.s32.totalorder %s25, 1
        %s299 = scalar_select %p298, %s25, 1
        %p300 = scmp.lt.s32.totalorder %s297, 1
        %s301 = scalar_select %p300, %s297, 1
        %s302 = smul.addr %s299, 2
        %s303 = sadd.s32 %s301, %s302
        %s304 = smul.addr %s303, 4
        %s305 = scalar_lea.vmem %s0, %s304
        %s306 = smul.u32 2, %s26
        %s307 = smul.u32 2, %s26
        %v308 = vld [vmem:[%s1] sm:$0xff]
        %v309 = vld [vmem:[%s1 + $0x8] sm:$0xff]
        %v310 = vld [vmem:[%s1 + $0x10] sm:$0xff]
        %v311 = vld [vmem:[%s1 + $0x18] sm:$0xff]
        %v312 = vld [vmem:[%s3] sm:$0xff]
        %v313 = vld [vmem:[%s3 + $0x8] sm:$0xff]
        %v314 = vld [vmem:[%s3 + $0x10] sm:$0xff]
        %v315 = vld [vmem:[%s3 + $0x18] sm:$0xff]
        %v316 = vld [vmem:[%s5] sm:$0xff]
        %v317 = vld [vmem:[%s5 + $0x8] sm:$0xff]
        %v318 = vld [vmem:[%s5 + $0x10] sm:$0xff]
        %v319 = vld [vmem:[%s5 + $0x18] sm:$0xff]
        %v320 = vld [vmem:[%s2] sm:$0xff]
        %v321 = vld [vmem:[%s2 + $0x8] sm:$0xff]
        %v322 = vld [vmem:[%s2 + $0x10] sm:$0xff]
        %v323 = vld [vmem:[%s2 + $0x18] sm:$0xff]
        %v324 = vld [vmem:[%s4] sm:$0xff]
        %v325 = vld [vmem:[%s4 + $0x8] sm:$0xff]
        %v326 = vld [vmem:[%s4 + $0x10] sm:$0xff]
        %v327 = vld [vmem:[%s4 + $0x18] sm:$0xff]
        %v328 = vld [vmem:[%s6] sm:$0xff]
        %v329 = vld [vmem:[%s6 + $0x8] sm:$0xff]
        %v330 = vld [vmem:[%s6 + $0x10] sm:$0xff]
        %v331 = vld [vmem:[%s6 + $0x18] sm:$0xff]
        %v332 = vld [vmem:[%s305] sm:$0xff]
        %334 = vset.pattern.permute.xlu0 0
        %335 = vperm.xlu0 %334, %v320
        %v336 = vpop.permute.xlu0 %335
        %339 = vset.pattern.permute.xlu0 0
        %340 = vperm.xlu0 %339, %v321
        %v341 = vpop.permute.xlu0 %340
        %344 = vset.pattern.permute.xlu0 0
        %345 = vperm.xlu0 %344, %v322
        %v346 = vpop.permute.xlu0 %345
        %349 = vset.pattern.permute.xlu0 0
        %350 = vperm.xlu0 %349, %v323
        %v351 = vpop.permute.xlu0 %350
        %v354 = vcombine.high %v332, %v332
        %vm355 = vcmask 31744
        %v357 = vsel %vm355, %v308, 0
        %v360 = vsel %vm355, %v309, 0
        %v363 = vsel %vm355, %v310, 0
        %v366 = vsel %vm355, %v311, 0
        %vm368 = vcmask 1043456
        %v369 = vsel %vm368, %v332, 0
        %v371 = vsel %vm368, %v354, 0
        %373 = vmatprep.subr.mxu0 %v371
        %374 = vmatpush1.msra.mxu0 %v369
        %375 = vmatprep.subr.mxu0 0.0
        %376 = vmatpush1.msra.mxu0 0.0
        %377 = vmatprep.subr.mxu0 0.0
        %378 = vmatpush1.msra.mxu0 0.0
        %379 = vmatprep.subr.mxu0 0.0
        %380 = vmatpush1.msra.mxu0 0.0
        %381 = vmatprep.subr.mxu0 0.0
        %382 = vmatpush1.msra.mxu0 0.0
        %383 = vmatprep.subr.mxu0 0.0
        %384 = vmatpush1.msra.mxu0 0.0
        %385 = vmatprep.subr.mxu0 0.0
        %386 = vmatpush1.msra.mxu0 0.0
        %387 = vmatprep.subr.mxu0 0.0
        %388 = vmatpush1.msra.mxu0 0.0
        %389 = vmatprep.subr.mxu0 0.0
        %390 = vmatpush1.msra.mxu0 0.0
        %391 = vmatprep.subr.mxu0 0.0
        %392 = vmatpush1.msra.mxu0 0.0
        %393 = vmatprep.subr.mxu0 0.0
        %394 = vmatpush1.msra.mxu0 0.0
        %395 = vmatprep.subr.mxu0 0.0
        %396 = vmatpush1.msra.mxu0 0.0
        %397 = vmatprep.subr.mxu0 0.0
        %398 = vmatpush1.msra.mxu0 0.0
        %399 = vmatprep.subr.mxu0 0.0
        %400 = vmatpush1.msra.mxu0 0.0
        %401 = vmatprep.subr.mxu0 0.0
        %402 = vmatpush1.msra.mxu0 0.0
        %403 = vmatprep.subr.mxu0 0.0
        %404 = vmatpush1.msra.mxu0 0.0
        %405 = vmatprep.subr.mxu0 0.0
        %406 = vmatpush1.msra.mxu0 0.0
        %407 = vmatprep.subr.mxu0 0.0
        %408 = vmatpush1.msra.mxu0 0.0
        %409 = vmatprep.subr.mxu0 0.0
        %410 = vmatpush1.msra.mxu0 0.0
        %411 = vmatprep.subr.mxu0 0.0
        %412 = vmatpush1.msra.mxu0 0.0
        %413 = vmatprep.subr.mxu0 0.0
        %414 = vmatpush1.msra.mxu0 0.0
        %415 = vmatprep.subr.mxu0 0.0
        %416 = vmatpush1.msra.mxu0 0.0
        %417 = vmatprep.subr.mxu0 0.0
        %418 = vmatpush1.msra.mxu0 0.0
        %419 = vmatprep.subr.mxu0 0.0
        %420 = vmatpush1.msra.mxu0 0.0
        %421 = vmatprep.subr.mxu0 0.0
        %422 = vmatpush1.msra.mxu0 0.0
        %423 = vmatprep.subr.mxu0 0.0
        %424 = vmatpush1.msra.mxu0 0.0
        %425 = vmatprep.subr.mxu0 0.0
        %426 = vmatpush1.msra.mxu0 0.0
        %427 = vmatprep.subr.mxu0 0.0
        %428 = vmatpush1.msra.mxu0 0.0
        %429 = vmatprep.subr.mxu0 0.0
        %430 = vmatpush1.msra.mxu0 0.0
        %431 = vmatprep.subr.mxu0 0.0
        %432 = vmatpush1.msra.mxu0 0.0
        %433 = vmatprep.subr.mxu0 0.0
        %434 = vmatpush1.msra.mxu0 0.0
        %435 = vmatprep.subr.mxu0 0.0
        %436 = vmatpush1.msra.mxu0 0.0
        %437 = vmatprep.mubr.f32.mxu0 0.0
        %438 = vmatmul.mubr.f32.gmra.mrb[0].mxu0 %v357
        %v439 = vpop.f32.mrb[0].mxu0
        %v440 = vadd.f32 %v336, %v439
        %v441 = vpop.f32.mrb[0].mxu0
        %v442 = vadd.f32 %v336, %v441
        %443 = vmatprep.mubr.f32.mxu0 0.0
        %444 = vmatmul.mubr.f32.gmra.mrb[0].mxu0 %v360
        %v445 = vpop.f32.mrb[0].mxu0
        %v446 = vadd.f32 %v341, %v445
        %v447 = vpop.f32.mrb[0].mxu0
        %v448 = vadd.f32 %v341, %v447
        %449 = vmatprep.mubr.f32.mxu0 0.0
        %450 = vmatmul.mubr.f32.gmra.mrb[0].mxu0 %v363
        %v451 = vpop.f32.mrb[0].mxu0
        %v452 = vadd.f32 %v346, %v451
        %v453 = vpop.f32.mrb[0].mxu0
        %v454 = vadd.f32 %v346, %v453
        %455 = vmatprep.mubr.f32.mxu0 0.0
        %456 = vmatmul.mubr.f32.gmra.mrb[0].mxu0 %v366
        %v457 = vpop.f32.mrb[0].mxu0
        %v458 = vadd.f32 %v351, %v457
        %v459 = vpop.f32.mrb[0].mxu0
        %v460 = vadd.f32 %v351, %v459
        %461 = vdwg.mxu0
        %v462 = vmax.f32 %v440, 0.0
        %v463 = vmax.f32 %v442, 0.0
        %v464 = vmax.f32 %v446, 0.0
        %v465 = vmax.f32 %v448, 0.0
        %v466 = vmax.f32 %v452, 0.0
        %v467 = vmax.f32 %v454, 0.0
        %v468 = vmax.f32 %v458, 0.0
        %v469 = vmax.f32 %v460, 0.0
        %471 = vset.pattern.permute.xlu0 0
        %472 = vperm.xlu0 %471, %v324
        %v473 = vpop.permute.xlu0 %472
        %476 = vset.pattern.permute.xlu0 0
        %477 = vperm.xlu0 %476, %v325
        %v478 = vpop.permute.xlu0 %477
        %481 = vset.pattern.permute.xlu0 0
        %482 = vperm.xlu0 %481, %v326
        %v483 = vpop.permute.xlu0 %482
        %486 = vset.pattern.permute.xlu0 0
        %487 = vperm.xlu0 %486, %v327
        %v488 = vpop.permute.xlu0 %487
        %vm490 = vcmask 261120
        %v492 = vsel %vm490, %v312, 0
        %v495 = vsel %vm490, %v313, 0
        %v498 = vsel %vm490, %v314, 0
        %v501 = vsel %vm490, %v315, 0
        %503 = vmatprep.subr.mxu0 %v463
        %504 = vmatpush1.msra.mxu0 %v462
        %505 = vmatprep.subr.mxu0 %v465
        %506 = vmatpush1.msra.mxu0 %v464
        %507 = vmatprep.subr.mxu0 %v467
        %508 = vmatpush1.msra.mxu0 %v466
        %509 = vmatprep.subr.mxu0 %v469
        %510 = vmatpush1.msra.mxu0 %v468
        %511 = vmatprep.subr.mxu0 0.0
        %512 = vmatpush1.msra.mxu0 0.0
        %513 = vmatprep.subr.mxu0 0.0
        %514 = vmatpush1.msra.mxu0 0.0
        %515 = vmatprep.subr.mxu0 0.0
        %516 = vmatpush1.msra.mxu0 0.0
        %517 = vmatprep.subr.mxu0 0.0
        %518 = vmatpush1.msra.mxu0 0.0
        %519 = vmatprep.subr.mxu0 0.0
        %520 = vmatpush1.msra.mxu0 0.0
        %521 = vmatprep.subr.mxu0 0.0
        %522 = vmatpush1.msra.mxu0 0.0
        %523 = vmatprep.subr.mxu0 0.0
        %524 = vmatpush1.msra.mxu0 0.0
        %525 = vmatprep.subr.mxu0 0.0
        %526 = vmatpush1.msra.mxu0 0.0
        %527 = vmatprep.subr.mxu0 0.0
        %528 = vmatpush1.msra.mxu0 0.0
        %529 = vmatprep.subr.mxu0 0.0
        %530 = vmatpush1.msra.mxu0 0.0
        %531 = vmatprep.subr.mxu0 0.0
        %532 = vmatpush1.msra.mxu0 0.0
        %533 = vmatprep.subr.mxu0 0.0
        %534 = vmatpush1.msra.mxu0 0.0
        %535 = vmatprep.subr.mxu0 0.0
        %536 = vmatpush1.msra.mxu0 0.0
        %537 = vmatprep.subr.mxu0 0.0
        %538 = vmatpush1.msra.mxu0 0.0
        %539 = vmatprep.subr.mxu0 0.0
        %540 = vmatpush1.msra.mxu0 0.0
        %541 = vmatprep.subr.mxu0 0.0
        %542 = vmatpush1.msra.mxu0 0.0
        %543 = vmatprep.subr.mxu0 0.0
        %544 = vmatpush1.msra.mxu0 0.0
        %545 = vmatprep.subr.mxu0 0.0
        %546 = vmatpush1.msra.mxu0 0.0
        %547 = vmatprep.subr.mxu0 0.0
        %548 = vmatpush1.msra.mxu0 0.0
        %549 = vmatprep.subr.mxu0 0.0
        %550 = vmatpush1.msra.mxu0 0.0
        %551 = vmatprep.subr.mxu0 0.0
        %552 = vmatpush1.msra.mxu0 0.0
        %553 = vmatprep.subr.mxu0 0.0
        %554 = vmatpush1.msra.mxu0 0.0
        %555 = vmatprep.subr.mxu0 0.0
        %556 = vmatpush1.msra.mxu0 0.0
        %557 = vmatprep.subr.mxu0 0.0
        %558 = vmatpush1.msra.mxu0 0.0
        %559 = vmatprep.subr.mxu0 0.0
        %560 = vmatpush1.msra.mxu0 0.0
        %561 = vmatprep.subr.mxu0 0.0
        %562 = vmatpush1.msra.mxu0 0.0
        %563 = vmatprep.subr.mxu0 0.0
        %564 = vmatpush1.msra.mxu0 0.0
        %565 = vmatprep.subr.mxu0 0.0
        %566 = vmatpush1.msra.mxu0 0.0
        %567 = vmatprep.mubr.f32.mxu0 0.0
        %568 = vmatmul.mubr.f32.gmra.mrb[0].mxu0 %v492
        %v569 = vpop.f32.mrb[0].mxu0
        %v570 = vadd.f32 %v473, %v569
        %v571 = vpop.f32.mrb[0].mxu0
        %v572 = vadd.f32 %v473, %v571
        %573 = vmatprep.mubr.f32.mxu0 0.0
        %574 = vmatmul.mubr.f32.gmra.mrb[0].mxu0 %v495
        %v575 = vpop.f32.mrb[0].mxu0
        %v576 = vadd.f32 %v478, %v575
        %v577 = vpop.f32.mrb[0].mxu0
        %v578 = vadd.f32 %v478, %v577
        %579 = vmatprep.mubr.f32.mxu0 0.0
        %580 = vmatmul.mubr.f32.gmra.mrb[0].mxu0 %v498
        %v581 = vpop.f32.mrb[0].mxu0
        %v582 = vadd.f32 %v483, %v581
        %v583 = vpop.f32.mrb[0].mxu0
        %v584 = vadd.f32 %v483, %v583
        %585 = vmatprep.mubr.f32.mxu0 0.0
        %586 = vmatmul.mubr.f32.gmra.mrb[0].mxu0 %v501
        %v587 = vpop.f32.mrb[0].mxu0
        %v588 = vadd.f32 %v488, %v587
        %v589 = vpop.f32.mrb[0].mxu0
        %v590 = vadd.f32 %v488, %v589
        %591 = vdwg.mxu0
        %v592 = vmax.f32 %v570, 0.0
        %v593 = vmax.f32 %v572, 0.0
        %v594 = vmax.f32 %v576, 0.0
        %v595 = vmax.f32 %v578, 0.0
        %v596 = vmax.f32 %v582, 0.0
        %v597 = vmax.f32 %v584, 0.0
        %v598 = vmax.f32 %v588, 0.0
        %v599 = vmax.f32 %v590, 0.0
        %601 = vset.pattern.permute.xlu0 0
        %602 = vperm.xlu0 %601, %v328
        %v603 = vpop.permute.xlu0 %602
        %606 = vset.pattern.permute.xlu0 0
        %607 = vperm.xlu0 %606, %v329
        %v608 = vpop.permute.xlu0 %607
        %611 = vset.pattern.permute.xlu0 0
        %612 = vperm.xlu0 %611, %v330
        %v613 = vpop.permute.xlu0 %612
        %616 = vset.pattern.permute.xlu0 0
        %617 = vperm.xlu0 %616, %v331
        %v618 = vpop.permute.xlu0 %617
        %v621 = vsel %vm490, %v316, 0
        %v624 = vsel %vm490, %v317, 0
        %v627 = vsel %vm490, %v318, 0
        %v630 = vsel %vm490, %v319, 0
        %632 = vmatprep.subr.mxu0 %v593
        %633 = vmatpush1.msra.mxu0 %v592
        %634 = vmatprep.subr.mxu0 %v595
        %635 = vmatpush1.msra.mxu0 %v594
        %636 = vmatprep.subr.mxu0 %v597
        %637 = vmatpush1.msra.mxu0 %v596
        %638 = vmatprep.subr.mxu0 %v599
        %639 = vmatpush1.msra.mxu0 %v598
        %640 = vmatprep.subr.mxu0 0.0
        %641 = vmatpush1.msra.mxu0 0.0
        %642 = vmatprep.subr.mxu0 0.0
        %643 = vmatpush1.msra.mxu0 0.0
        %644 = vmatprep.subr.mxu0 0.0
        %645 = vmatpush1.msra.mxu0 0.0
        %646 = vmatprep.subr.mxu0 0.0
        %647 = vmatpush1.msra.mxu0 0.0
        %648 = vmatprep.subr.mxu0 0.0
        %649 = vmatpush1.msra.mxu0 0.0
        %650 = vmatprep.subr.mxu0 0.0
        %651 = vmatpush1.msra.mxu0 0.0
        %652 = vmatprep.subr.mxu0 0.0
        %653 = vmatpush1.msra.mxu0 0.0
        %654 = vmatprep.subr.mxu0 0.0
        %655 = vmatpush1.msra.mxu0 0.0
        %656 = vmatprep.subr.mxu0 0.0
        %657 = vmatpush1.msra.mxu0 0.0
        %658 = vmatprep.subr.mxu0 0.0
        %659 = vmatpush1.msra.mxu0 0.0
        %660 = vmatprep.subr.mxu0 0.0
        %661 = vmatpush1.msra.mxu0 0.0
        %662 = vmatprep.subr.mxu0 0.0
        %663 = vmatpush1.msra.mxu0 0.0
        %664 = vmatprep.subr.mxu0 0.0
        %665 = vmatpush1.msra.mxu0 0.0
        %666 = vmatprep.subr.mxu0 0.0
        %667 = vmatpush1.msra.mxu0 0.0
        %668 = vmatprep.subr.mxu0 0.0
        %669 = vmatpush1.msra.mxu0 0.0
        %670 = vmatprep.subr.mxu0 0.0
        %671 = vmatpush1.msra.mxu0 0.0
        %672 = vmatprep.subr.mxu0 0.0
        %673 = vmatpush1.msra.mxu0 0.0
        %674 = vmatprep.subr.mxu0 0.0
        %675 = vmatpush1.msra.mxu0 0.0
        %676 = vmatprep.subr.mxu0 0.0
        %677 = vmatpush1.msra.mxu0 0.0
        %678 = vmatprep.subr.mxu0 0.0
        %679 = vmatpush1.msra.mxu0 0.0
        %680 = vmatprep.subr.mxu0 0.0
        %681 = vmatpush1.msra.mxu0 0.0
        %682 = vmatprep.subr.mxu0 0.0
        %683 = vmatpush1.msra.mxu0 0.0
        %684 = vmatprep.subr.mxu0 0.0
        %685 = vmatpush1.msra.mxu0 0.0
        %686 = vmatprep.subr.mxu0 0.0
        %687 = vmatpush1.msra.mxu0 0.0
        %688 = vmatprep.subr.mxu0 0.0
        %689 = vmatpush1.msra.mxu0 0.0
        %690 = vmatprep.subr.mxu0 0.0
        %691 = vmatpush1.msra.mxu0 0.0
        %692 = vmatprep.subr.mxu0 0.0
        %693 = vmatpush1.msra.mxu0 0.0
        %694 = vmatprep.subr.mxu0 0.0
        %695 = vmatpush1.msra.mxu0 0.0
        %696 = vmatprep.mubr.f32.mxu0 0.0
        %697 = vmatmul.mubr.f32.gmra.mrb[0].mxu0 %v621
        %v698 = vpop.f32.mrb[0].mxu0
        %v699 = vadd.f32 %v603, %v698
        %v700 = vpop.f32.mrb[0].mxu0
        %v701 = vadd.f32 %v603, %v700
        %702 = vmatprep.mubr.f32.mxu0 0.0
        %703 = vmatmul.mubr.f32.gmra.mrb[0].mxu0 %v624
        %v704 = vpop.f32.mrb[0].mxu0
        %v705 = vadd.f32 %v608, %v704
        %v706 = vpop.f32.mrb[0].mxu0
        %v707 = vadd.f32 %v608, %v706
        %708 = vmatprep.mubr.f32.mxu0 0.0
        %709 = vmatmul.mubr.f32.gmra.mrb[0].mxu0 %v627
        %v710 = vpop.f32.mrb[0].mxu0
        %v711 = vadd.f32 %v613, %v710
        %v712 = vpop.f32.mrb[0].mxu0
        %v713 = vadd.f32 %v613, %v712
        %714 = vmatprep.mubr.f32.mxu0 0.0
        %715 = vmatmul.mubr.f32.gmra.mrb[0].mxu0 %v630
        %v716 = vpop.f32.mrb[0].mxu0
        %v717 = vadd.f32 %v618, %v716
        %v718 = vpop.f32.mrb[0].mxu0
        %v719 = vadd.f32 %v618, %v718
        %720 = vdwg.mxu0
        %v721 = vmax.f32 %v699, 0.0
        %v722 = vmax.f32 %v701, 0.0
        %v723 = vmax.f32 %v705, 0.0
        %v724 = vmax.f32 %v707, 0.0
        %v725 = vmax.f32 %v711, 0.0
        %v726 = vmax.f32 %v713, 0.0
        %v727 = vmax.f32 %v717, 0.0
        %v728 = vmax.f32 %v719, 0.0
        %729 = vst [vmem:[%s296] sm:$0xff] %v721
        %730 = vst [vmem:[%s296 + $0x8] sm:$0xff] %v722
        %731 = vst [vmem:[%s296 + $0x10] sm:$0xff] %v723
        %732 = vst [vmem:[%s296 + $0x18] sm:$0xff] %v724
        %733 = vst [vmem:[%s296 + $0x20] sm:$0xff] %v725
        %734 = vst [vmem:[%s296 + $0x28] sm:$0xff] %v726
        %735 = vst [vmem:[%s296 + $0x30] sm:$0xff] %v727
        %736 = vst [vmem:[%s296 + $0x38] sm:$0xff] %v728
        %s737 = sand.u32 %s197, 1
        %s738 = scalar_lea.sflag [#allocation3], %s737
        %s739 = sand.u32 %s197, 1
        %s740 = smul.addr %s739, 64
        %s741 = scalar_lea.vmem [#allocation2], %s740
        // Predicated region
        $region49: #{tpu_custom_call.1} parent=47 // pred_check
          %p742 = pneg %p207
        $region50: #{tpu_custom_call.1} parent=47 // pred_check_branch
          %744 = sbr.rel (%p742) target = $region52
        $region51: #{tpu_custom_call.1} parent=47 // pred_region
          %s745 = smul.u32 2, %s26
          %s747 = ssub.s32 1024, 1024
          %748 = vsyncadd %s738, %s747
          %s749 = smul.addr %s25, 8
          %s750 = sadd.s32 %s745, %s749
          %s751 = smul.addr %s750, 128
          %s752 = scalar_lea.hbm %s7, %s751
          %s753 = sshll.u32 %s741, 4
          %s754 = int_to_ptr.vmem [resolvable:$true] %s753
          %759 = dma.vmem_to_hbm [thread:$0]  %s754, 1024, %s752, %s738, 256, 256, 16
        $region52: #{tpu_custom_call.1} parent=47 // pred_fallthru
          _
      $region48: #{tpu_custom_call.1} parent=5 // pred_fallthru
        _
      %p760 = scmp.le.s32.totalorder 2, %s16
      // Predicated region
      $region53: #{tpu_custom_call.1} parent=5 // pred_check
        %p761 = pneg %p760
      $region54: #{tpu_custom_call.1} parent=5 // pred_check_branch
        %763 = sbr.rel (%p761) target = $region56
      $region55: #{tpu_custom_call.1} parent=5 // pred_region
        %s764 = ssub.s32 %s16, 2
        // Predicated region
        $region57: #{tpu_custom_call.1} parent=55 // pred_check
          %p765 = pneg %p213
        $region58: #{tpu_custom_call.1} parent=55 // pred_check_branch
          %767 = sbr.rel (%p765) target = $region60
        $region59: #{tpu_custom_call.1} parent=55 // pred_region
          %s768 = sand.u32 %s198, 1
          %s769 = scalar_lea.sflag [#allocation3], %s768
          %s770 = sand.u32 %s198, 1
          %s771 = smul.addr %s770, 64
          %s772 = scalar_lea.vmem [#allocation2], %s771
          %773 = dma.done %s769, 1024
        $region60: #{tpu_custom_call.1} parent=55 // pred_fallthru
          _
      $region56: #{tpu_custom_call.1} parent=5 // pred_fallthru
        _
    $region6: #{tpu_custom_call.1} parent=1 // loop_footer
      %s20 = sadd.s32 1, %s16
    $region7: #{tpu_custom_call.1} parent=1 // loop_footer_branch
      %15 = sbr.rel target = $region3
    $region8: #{tpu_custom_call.1} parent=1 // loop_exit
      _
    %774 = vsyncpa [#allocation3], 1
    %s775 = scalar_lea.sflag [#allocation3], 1
    %776 = vsyncpa %s775, 1

</llo_original>
